<compile_context>
chip_gen: v7x
topology: tpu7x:2x2x1
jax: 0.10.0
libtpu: 0.0.40
codegen_flags: <defaults>
</compile_context>

<pallas_src>
import functools

import numpy as np

import jax
import jax.numpy as jnp
from jax.experimental import pallas as pl
from jax.experimental.pallas import tpu as pltpu


def _attention_layer_kernel(q_ref, k_ref, v_ref,
                            wq_ref, bq_ref,
                            wk_ref, bk_ref,
                            wv_ref, bv_ref,
                            wo_ref, bo_ref,
                            out_ref, *attn_refs,
                            n_heads, d_k, d_v, approx_recip):
    attn_ref = attn_refs[0] if attn_refs else None
    H = n_heads
    Bt, Lt, D = q_ref.shape
    _, S, _ = k_ref.shape
    cdt = q_ref.dtype          # MXU operand dtype (f32 or bf16)
    out_dim = out_ref.shape[-1]

    q2 = q_ref[...].reshape(Bt * Lt, D)
    k2 = k_ref[...].reshape(Bt * S, D)
    v2 = v_ref[...].reshape(Bt * S, D)

    # Wide projections (N = H*d_head keeps the MXU fed); f32 accumulation and
    # f32 bias add, then a single cast to the compute dtype.  1/sqrt(d_k) is
    # already folded into (Wq, bq) by the wrapper.
    Q = (jnp.dot(q2, wq_ref[...], preferred_element_type=jnp.float32)
         + bq_ref[...]).astype(cdt)
    K = (jnp.dot(k2, wk_ref[...], preferred_element_type=jnp.float32)
         + bk_ref[...]).astype(cdt)
    V = (jnp.dot(v2, wv_ref[...], preferred_element_type=jnp.float32)
         + bv_ref[...]).astype(cdt)

    acc = jnp.zeros((Bt * Lt, out_dim), jnp.float32)

    for h in range(H):
        # Static lane-window slices -- no head-major transposes, no copies of
        # the full activation tensors.
        Qh = Q[:, h * d_k:(h + 1) * d_k].reshape(Bt, Lt, d_k)
        Kh = K[:, h * d_k:(h + 1) * d_k].reshape(Bt, S, d_k)
        Vh = V[:, h * d_v:(h + 1) * d_v].reshape(Bt, S, d_v)

        # Batched QK^T (scale pre-folded into Wq).  f32 scores for softmax.
        scores = jnp.einsum("bqd,bkd->bqk", Qh, Kh,
                            preferred_element_type=jnp.float32)   # (Bt,Lt,S)

        # Numerically stable softmax in f32; reciprocal on the EUP.
        m = jnp.max(scores, axis=-1, keepdims=True)
        e = jnp.exp(scores - m)
        r = pl.reciprocal(jnp.sum(e, axis=-1, keepdims=True),
                          approx=approx_recip)

        if attn_ref is not None:
            A = e * r
            attn_ref[:, h, :, :] = A.astype(attn_ref.dtype)
            ctx = jnp.einsum("bqk,bkd->bqd", A.astype(cdt), Vh,
                             preferred_element_type=jnp.float32)  # (Bt,Lt,dv)
        else:
            # Fold the normalization into the (much smaller) context tensor.
            ctx = jnp.einsum("bqk,bkd->bqd", e.astype(cdt), Vh,
                             preferred_element_type=jnp.float32) * r

        # Per-head partial out-projection, accumulated in f32 -- this replaces
        # the ctx re-pack transpose of the previous version entirely.
        acc += jnp.dot(ctx.reshape(Bt * Lt, d_v).astype(cdt),
                       wo_ref[h * d_v:(h + 1) * d_v, :],
                       preferred_element_type=jnp.float32)

    out = acc + bo_ref[...]
    out_ref[...] = out.reshape(out_ref.shape).astype(out_ref.dtype)


def _physical_vmem_bytes():
    """Per-core VMEM capacity; conservative fallback if the query fails."""
    try:
        info = pltpu.get_tpu_info()
        cap = getattr(info, "vmem_capacity_bytes", None)
        if cap:
            return int(cap)
    except Exception:
        pass
    return 64 * 1024 * 1024    # v7x per-TensorCore VMEM (smallest of v5e/v6e/v7x)


def _estimate_vmem_bytes(bb, bl, S, D, H, d_k, d_v, out_dim,
                         act_size, out_size, with_attn, attn_size):
    """Counts pipeline tiles AND in-kernel intermediates / resident weights."""
    f32 = 4
    # Double-buffered pipeline tiles (inputs + outputs).
    tiles = 2 * (bb * bl * D * act_size              # q tile
                 + 2 * bb * S * D * act_size         # k, v tiles
                 + bb * bl * out_dim * out_size)     # out tile
    if with_attn:
        tiles += 2 * bb * H * bl * S * attn_size     # attention tile
    # Resident weights / biases (constant index maps).
    weights = ((2 * H * d_k + H * d_v) * D + H * d_v * out_dim) * act_size \
              + (2 * H * d_k + H * d_v + out_dim) * f32
    # In-kernel intermediates: compute-dtype Q/K/V, one head's f32 scores/e
    # (+A when requested), per-head ctx, and the f32 output accumulator.
    inter = (bb * bl * H * d_k + bb * S * H * (d_k + d_v)) * act_size
    per_head = (3 if with_attn else 2) * bb * bl * S * f32 + bb * bl * d_v * f32
    acc = bb * bl * out_dim * f32
    return tiles + weights + inter + per_head + acc


def _choose_blocks(B, L, S, D, H, d_k, d_v, out_dim, act_size, out_size,
                   with_attn, attn_size, budget):
    def divisors(n):
        return [i for i in range(1, n + 1) if n % i == 0]

    # L blocks must obey the (8, 128) sublane rule: a multiple of 8, or L itself.
    l_cands = sorted({L} | {d for d in divisors(L) if d % 8 == 0})
    b_cands = divisors(B)

    feasible = []
    for bl in l_cands:
        for bb in b_cands:
            need = _estimate_vmem_bytes(bb, bl, S, D, H, d_k, d_v, out_dim,
                                        act_size, out_size, with_attn,
                                        attn_size)
            if need <= budget:
                feasible.append((bb, bl))
    if not feasible:
        return 1, min(l_cands)   # smallest config; may still spill

    def rank(cfg):
        bb, bl = cfg
        steps = (B // bb) * (L // bl)
        even = (steps >= 2 and steps % 2 == 0)
        # Largest block that fits (single-TC chips want max block size);
        # tie-break toward an even >= 2 step count so a two-TensorCore part
        # (v7x) splits the 'parallel' axes evenly; then fewer steps.
        return (bb * bl, even, -steps)

    return max(feasible, key=rank)


def attention_layer(queries, keys, values, params, n_heads, *,
                    compute_dtype=jnp.bfloat16, output_attention=True,
                    block_b=None, block_l=None):
    """Informer AttentionLayer forward (mix=False, FullAttention, no mask).

    params = (Wq, bq, Wk, bk, Wv, bv, Wo, bo); W* stored (in, out), b* (1, out).
    Returns (out, attn); attn is None when output_attention=False.
    """
    B, L, D = queries.shape
    _, S, _ = keys.shape
    Wq, bq, Wk, bk, Wv, bv, Wo, bo = params
    H = n_heads
    d_k = Wq.shape[1] // H
    d_v = Wv.shape[1] // H
    out_dim = Wo.shape[1]

    cdt = jnp.dtype(compute_dtype)
    approx_recip = cdt != jnp.dtype(jnp.float32)

    # Fold the 1/sqrt(d_k) attention scale into the query projection (free).
    scale = 1.0 / float(np.sqrt(d_k))

    q = queries.astype(cdt)
    k = keys.astype(cdt)
    v = values.astype(cdt)
    ws = [(Wq * scale).astype(cdt), Wk.astype(cdt), Wv.astype(cdt),
          Wo.astype(cdt)]
    bs = [(bq * scale).astype(jnp.float32), bk.astype(jnp.float32),
          bv.astype(jnp.float32), bo.astype(jnp.float32)]

    act_size = cdt.itemsize
    out_size = np.dtype(queries.dtype).itemsize
    attn_dtype = queries.dtype          # halves the big writeback for bf16 callers
    attn_size = np.dtype(attn_dtype).itemsize

    physical_vmem = _physical_vmem_bytes()
    vmem_limit = min(int(physical_vmem * 0.9), 120 * 1024 * 1024)
    budget = int(vmem_limit * 0.7)      # headroom for buffers the estimate misses

    if block_b is None or block_l is None:
        auto_bb, auto_bl = _choose_blocks(B, L, S, D, H, d_k, d_v, out_dim,
                                          act_size, out_size,
                                          output_attention, attn_size, budget)
        block_b = block_b or auto_bb
        block_l = block_l or auto_bl
    assert B % block_b == 0, "block_b must divide the batch size"
    assert L % block_l == 0, "block_l must divide the query length"
    assert block_l == L or block_l % 8 == 0, "block_l must be L or a multiple of 8"

    grid = (B // block_b, L // block_l)

    def const_spec(shape):
        n = len(shape)
        # Constant block index => weights stay resident, not re-DMA'd per step.
        return pl.BlockSpec(shape, lambda b, l, _n=n: (0,) * _n)

    kernel = functools.partial(_attention_layer_kernel, n_heads=H, d_k=d_k,
                               d_v=d_v, approx_recip=approx_recip)

    in_specs = [
        pl.BlockSpec((block_b, block_l, D), lambda b, l: (b, l, 0)),
        pl.BlockSpec((block_b, S, D), lambda b, l: (b, 0, 0)),   # resident across l
        pl.BlockSpec((block_b, S, D), lambda b, l: (b, 0, 0)),   # resident across l
        const_spec(ws[0].shape), const_spec(bs[0].shape),
        const_spec(ws[1].shape), const_spec(bs[1].shape),
        const_spec(ws[2].shape), const_spec(bs[2].shape),
        const_spec(ws[3].shape), const_spec(bs[3].shape),
    ]

    out_spec = pl.BlockSpec((block_b, block_l, out_dim), lambda b, l: (b, l, 0))
    out_shape = jax.ShapeDtypeStruct((B, L, out_dim), queries.dtype)

    if output_attention:
        out_shapes = (out_shape,
                      jax.ShapeDtypeStruct((B, H, L, S), attn_dtype))
        out_specs = (out_spec,
                     pl.BlockSpec((block_b, H, block_l, S),
                                  lambda b, l: (b, 0, l, 0)))
    else:
        out_shapes = out_shape
        out_specs = out_spec

    result = pl.pallas_call(
        kernel,
        out_shape=out_shapes,
        grid=grid,
        in_specs=in_specs,
        out_specs=out_specs,
        compiler_params=pltpu.CompilerParams(
            dimension_semantics=("parallel", "parallel"),
            vmem_limit_bytes=vmem_limit),
    )(q, k, v, ws[0], bs[0], ws[1], bs[1], ws[2], bs[2], ws[3], bs[3])

    if output_attention:
        out, attn = result
        return out, attn
    return result, None


def reference_attention_layer(queries, keys, values, params, n_heads):
    """Pure-JAX reference matching the PyTorch forward (FullAttention)."""
    B, L, D = queries.shape
    _, S, _ = keys.shape
    Wq, bq, Wk, bk, Wv, bv, Wo, bo = params
    H = n_heads
    d_k = Wq.shape[1] // H
    d_v = Wv.shape[1] // H

    Q = (queries @ Wq + bq).reshape(B, L, H, d_k)
    K = (keys @ Wk + bk).reshape(B, S, H, d_k)
    V = (values @ Wv + bv).reshape(B, S, H, d_v)

    scale = 1.0 / (d_k ** 0.5)
    scores = jnp.einsum("blhe,bshe->bhls", Q, K) * scale
    A = jax.nn.softmax(scores, axis=-1)
    out = jnp.einsum("bhls,bshd->blhd", A, V)     # (B, L, H, d_v)
    out = out.reshape(B, L, H * d_v)              # mix=False path
    out = out @ Wo + bo
    return out, A


def make_params(key, d_model, n_heads, d_keys=None, d_values=None):
    d_keys = d_keys or d_model // n_heads
    d_values = d_values or d_model // n_heads
    ks = jax.random.split(key, 8)
    scale = 0.1

    def lin(kw, kb, d_in, d_out):
        W = scale * jax.random.normal(kw, (d_in, d_out), dtype=jnp.float32)
        b = scale * jax.random.normal(kb, (1, d_out), dtype=jnp.float32)
        return W, b

    Wq, bq = lin(ks[0], ks[1], d_model, d_keys * n_heads)
    Wk, bk = lin(ks[2], ks[3], d_model, d_keys * n_heads)
    Wv, bv = lin(ks[4], ks[5], d_model, d_values * n_heads)
    Wo, bo = lin(ks[6], ks[7], d_values * n_heads, d_model)
    return (Wq, bq, Wk, bk, Wv, bv, Wo, bo)


if __name__ == "__main__":
    B, L, S, d_model, n_heads = 2, 8, 8, 32, 4

    key = jax.random.PRNGKey(0)
    kq, kk, kv, kp = jax.random.split(key, 4)
    queries = jax.random.normal(kq, (B, L, d_model), dtype=jnp.float32)
    keys = jax.random.normal(kk, (B, S, d_model), dtype=jnp.float32)
    values = jax.random.normal(kv, (B, S, d_model), dtype=jnp.float32)
    params = make_params(kp, d_model, n_heads)

    ref_out, ref_attn = reference_attention_layer(queries, keys, values,
                                                  params, n_heads)

    # Full-precision path, returning the attention matrix (matches PyTorch forward).
    out, attn = attention_layer(queries, keys, values, params, n_heads,
                                compute_dtype=jnp.float32,
                                output_attention=True)
    out = jax.block_until_ready(out)
    attn = jax.block_until_ready(attn)
    assert out.shape == (B, L, d_model)
    assert attn.shape == (B, n_heads, L, S)
    assert jnp.allclose(out, ref_out, atol=1e-4, rtol=1e-4)
    assert jnp.allclose(attn, ref_attn, atol=1e-4, rtol=1e-4)

    # Fast path: bf16 MXU operands (f32 accumulation/softmax), no attention output.
    out_fast, attn_none = attention_layer(queries, keys, values, params, n_heads,
                                          compute_dtype=jnp.bfloat16,
                                          output_attention=False)
    out_fast = jax.block_until_ready(out_fast)
    assert attn_none is None
    assert out_fast.shape == (B, L, d_model)
    assert jnp.allclose(out_fast, ref_out, atol=5e-2, rtol=5e-2)

    print("KERNEL_OK")
</pallas_src>

<mosaic_0001>
module attributes {stable_mosaic.version = 11 : i64} {
  func.func @_attention_layer_kernel(%arg0: i32, %arg1: i32, %arg2: memref<2x8x32xf32, #tpu.memory_space<vmem>>, %arg3: memref<2x8x32xf32, #tpu.memory_space<vmem>>, %arg4: memref<2x8x32xf32, #tpu.memory_space<vmem>>, %arg5: memref<32x32xf32, #tpu.memory_space<vmem>>, %arg6: memref<1x32xf32, #tpu.memory_space<vmem>>, %arg7: memref<32x32xf32, #tpu.memory_space<vmem>>, %arg8: memref<1x32xf32, #tpu.memory_space<vmem>>, %arg9: memref<32x32xf32, #tpu.memory_space<vmem>>, %arg10: memref<1x32xf32, #tpu.memory_space<vmem>>, %arg11: memref<32x32xf32, #tpu.memory_space<vmem>>, %arg12: memref<1x32xf32, #tpu.memory_space<vmem>>, %arg13: memref<2x8x32xf32, #tpu.memory_space<vmem>>, %arg14: memref<2x4x8x8xf32, #tpu.memory_space<vmem>>) attributes {dimension_semantics = [#tpu.dimension_semantics<parallel>, #tpu.dimension_semantics<parallel>], iteration_bounds = array<i64: 1, 1>, scalar_prefetch = 0 : i64, scratch_operands = 0 : i64, tpu.core_type = #tpu.core_type<tc>, window_params = [{transform_indices = @transform_0, window_bounds = array<i64: 2, 8, 32>}, {transform_indices = @transform_1, window_bounds = array<i64: 2, 8, 32>}, {transform_indices = @transform_2, window_bounds = array<i64: 2, 8, 32>}, {pipeline_mode = #tpu.pipeline_mode<synchronous>, transform_indices = @transform_3, window_bounds = array<i64: 32, 32>}, {pipeline_mode = #tpu.pipeline_mode<synchronous>, transform_indices = @transform_4, window_bounds = array<i64: 1, 32>}, {pipeline_mode = #tpu.pipeline_mode<synchronous>, transform_indices = @transform_5, window_bounds = array<i64: 32, 32>}, {pipeline_mode = #tpu.pipeline_mode<synchronous>, transform_indices = @transform_6, window_bounds = array<i64: 1, 32>}, {pipeline_mode = #tpu.pipeline_mode<synchronous>, transform_indices = @transform_7, window_bounds = array<i64: 32, 32>}, {pipeline_mode = #tpu.pipeline_mode<synchronous>, transform_indices = @transform_8, window_bounds = array<i64: 1, 32>}, {pipeline_mode = #tpu.pipeline_mode<synchronous>, transform_indices = @transform_9, window_bounds = array<i64: 32, 32>}, {pipeline_mode = #tpu.pipeline_mode<synchronous>, transform_indices = @transform_10, window_bounds = array<i64: 1, 32>}, {transform_indices = @transform_11, window_bounds = array<i64: 2, 8, 32>}, {transform_indices = @transform_12, window_bounds = array<i64: 2, 4, 8, 8>}]} {
    %c0 = arith.constant 0 : index
    %c0_0 = arith.constant 0 : index
    %c0_1 = arith.constant 0 : index
    %0 = vector.load %arg2[%c0, %c0_0, %c0_1] : memref<2x8x32xf32, #tpu.memory_space<vmem>>, vector<2x8x32xf32>
    %1 = vector.shape_cast %0 : vector<2x8x32xf32> to vector<16x32xf32>
    %c0_2 = arith.constant 0 : index
    %c0_3 = arith.constant 0 : index
    %c0_4 = arith.constant 0 : index
    %2 = vector.load %arg3[%c0_2, %c0_3, %c0_4] : memref<2x8x32xf32, #tpu.memory_space<vmem>>, vector<2x8x32xf32>
    %3 = vector.shape_cast %2 : vector<2x8x32xf32> to vector<16x32xf32>
    %c0_5 = arith.constant 0 : index
    %c0_6 = arith.constant 0 : index
    %c0_7 = arith.constant 0 : index
    %4 = vector.load %arg4[%c0_5, %c0_6, %c0_7] : memref<2x8x32xf32, #tpu.memory_space<vmem>>, vector<2x8x32xf32>
    %5 = vector.shape_cast %4 : vector<2x8x32xf32> to vector<16x32xf32>
    %c0_8 = arith.constant 0 : index
    %c0_9 = arith.constant 0 : index
    %6 = vector.load %arg5[%c0_8, %c0_9] : memref<32x32xf32, #tpu.memory_space<vmem>>, vector<32x32xf32>
    %cst = arith.constant dense<0.000000e+00> : vector<16x32xf32>
    %7 = tpu.matmul %1, %6, %cst {dimension_numbers = #tpu.dot_dimension_numbers<[1], [0], [0], [1], [0, 0, 1, 1], [], []>} : vector<16x32xf32>, vector<32x32xf32>, vector<16x32xf32> -> vector<16x32xf32>
    %c0_10 = arith.constant 0 : index
    %c0_11 = arith.constant 0 : index
    %8 = vector.load %arg6[%c0_10, %c0_11] : memref<1x32xf32, #tpu.memory_space<vmem>>, vector<1x32xf32>
    %9 = vector.broadcast %8 : vector<1x32xf32> to vector<16x32xf32>
    %10 = arith.addf %7, %9 : vector<16x32xf32>
    %c0_12 = arith.constant 0 : index
    %c0_13 = arith.constant 0 : index
    %11 = vector.load %arg7[%c0_12, %c0_13] : memref<32x32xf32, #tpu.memory_space<vmem>>, vector<32x32xf32>
    %cst_14 = arith.constant dense<0.000000e+00> : vector<16x32xf32>
    %12 = tpu.matmul %3, %11, %cst_14 {dimension_numbers = #tpu.dot_dimension_numbers<[1], [0], [0], [1], [0, 0, 1, 1], [], []>} : vector<16x32xf32>, vector<32x32xf32>, vector<16x32xf32> -> vector<16x32xf32>
    %c0_15 = arith.constant 0 : index
    %c0_16 = arith.constant 0 : index
    %13 = vector.load %arg8[%c0_15, %c0_16] : memref<1x32xf32, #tpu.memory_space<vmem>>, vector<1x32xf32>
    %14 = vector.broadcast %13 : vector<1x32xf32> to vector<16x32xf32>
    %15 = arith.addf %12, %14 : vector<16x32xf32>
    %c0_17 = arith.constant 0 : index
    %c0_18 = arith.constant 0 : index
    %16 = vector.load %arg9[%c0_17, %c0_18] : memref<32x32xf32, #tpu.memory_space<vmem>>, vector<32x32xf32>
    %cst_19 = arith.constant dense<0.000000e+00> : vector<16x32xf32>
    %17 = tpu.matmul %5, %16, %cst_19 {dimension_numbers = #tpu.dot_dimension_numbers<[1], [0], [0], [1], [0, 0, 1, 1], [], []>} : vector<16x32xf32>, vector<32x32xf32>, vector<16x32xf32> -> vector<16x32xf32>
    %c0_20 = arith.constant 0 : index
    %c0_21 = arith.constant 0 : index
    %18 = vector.load %arg10[%c0_20, %c0_21] : memref<1x32xf32, #tpu.memory_space<vmem>>, vector<1x32xf32>
    %19 = vector.broadcast %18 : vector<1x32xf32> to vector<16x32xf32>
    %20 = arith.addf %17, %19 : vector<16x32xf32>
    %cst_22 = arith.constant 0.000000e+00 : f32
    %21 = vector.broadcast %cst_22 : f32 to vector<16x32xf32>
    %22 = vector.extract_strided_slice %10 {offsets = [0, 0], sizes = [16, 8], strides = [1, 1]} : vector<16x32xf32> to vector<16x8xf32>
    %23 = vector.shape_cast %22 : vector<16x8xf32> to vector<2x8x8xf32>
    %24 = vector.extract_strided_slice %15 {offsets = [0, 0], sizes = [16, 8], strides = [1, 1]} : vector<16x32xf32> to vector<16x8xf32>
    %25 = vector.shape_cast %24 : vector<16x8xf32> to vector<2x8x8xf32>
    %26 = vector.extract_strided_slice %20 {offsets = [0, 0], sizes = [16, 8], strides = [1, 1]} : vector<16x32xf32> to vector<16x8xf32>
    %27 = vector.shape_cast %26 : vector<16x8xf32> to vector<2x8x8xf32>
    "tpu.trace_start"() <{level = 10 : i32, message = "bqd,bkd->bqk"}> : () -> ()
    %cst_23 = arith.constant dense<0.000000e+00> : vector<2x8x8xf32>
    %28 = tpu.matmul %23, %25, %cst_23 {dimension_numbers = #tpu.dot_dimension_numbers<[2], [2], [1], [1], [0, 0, 0, 1, 1, 1], [0], [0]>} : vector<2x8x8xf32>, vector<2x8x8xf32>, vector<2x8x8xf32> -> vector<2x8x8xf32>
    "tpu.trace_stop"() : () -> ()
    %cst_24 = arith.constant dense<0xFF800000> : vector<2x8xf32>
    %29 = vector.multi_reduction <maximumf>, %28, %cst_24 [2] : vector<2x8x8xf32> to vector<2x8xf32>
    %30 = vector.shape_cast %29 : vector<2x8xf32> to vector<2x8x1xf32>
    %31 = vector.broadcast %30 : vector<2x8x1xf32> to vector<2x8x8xf32>
    %32 = arith.subf %28, %31 : vector<2x8x8xf32>
    %33 = math.exp %32 : vector<2x8x8xf32>
    %cst_25 = arith.constant dense<0.000000e+00> : vector<2x8xf32>
    %34 = vector.multi_reduction <add>, %33, %cst_25 [2] : vector<2x8x8xf32> to vector<2x8xf32>
    %35 = vector.shape_cast %34 : vector<2x8xf32> to vector<2x8x1xf32>
    %36 = tpu.reciprocal %35 : vector<2x8x1xf32> -> vector<2x8x1xf32>
    %37 = vector.broadcast %36 : vector<2x8x1xf32> to vector<2x8x8xf32>
    %38 = arith.mulf %33, %37 : vector<2x8x8xf32>
    %c0_26 = arith.constant 0 : index
    %c0_27 = arith.constant 0 : index
    %c0_28 = arith.constant 0 : index
    %c0_29 = arith.constant 0 : index
    %39 = vector.load %arg14[%c0_26, %c0_27, %c0_28, %c0_29] : memref<2x4x8x8xf32, #tpu.memory_space<vmem>>, vector<2x1x8x8xf32>
    %40 = vector.shape_cast %39 : vector<2x1x8x8xf32> to vector<2x8x8xf32>
    %41 = vector.shape_cast %38 : vector<2x8x8xf32> to vector<2x1x8x8xf32>
    tpu.vector_store %arg14[%c0_26, %c0_27, %c0_28, %c0_29], %41 {strides = array<i32>} : memref<2x4x8x8xf32, #tpu.memory_space<vmem>>, vector<2x1x8x8xf32>,
    "tpu.trace_start"() <{level = 10 : i32, message = "bqk,bkd->bqd"}> : () -> ()
    %cst_30 = arith.constant dense<0.000000e+00> : vector<2x8x8xf32>
    %42 = tpu.matmul %38, %27, %cst_30 {dimension_numbers = #tpu.dot_dimension_numbers<[2], [1], [1], [2], [0, 0, 0, 1, 1, 2], [0], [0]>} : vector<2x8x8xf32>, vector<2x8x8xf32>, vector<2x8x8xf32> -> vector<2x8x8xf32>
    "tpu.trace_stop"() : () -> ()
    %43 = vector.shape_cast %42 : vector<2x8x8xf32> to vector<16x8xf32>
    %c0_31 = arith.constant 0 : index
    %c0_32 = arith.constant 0 : index
    %44 = vector.load %arg11[%c0_31, %c0_32] : memref<32x32xf32, #tpu.memory_space<vmem>>, vector<8x32xf32>
    %cst_33 = arith.constant dense<0.000000e+00> : vector<16x32xf32>
    %45 = tpu.matmul %43, %44, %cst_33 {dimension_numbers = #tpu.dot_dimension_numbers<[1], [0], [0], [1], [0, 0, 1, 1], [], []>} : vector<16x8xf32>, vector<8x32xf32>, vector<16x32xf32> -> vector<16x32xf32>
    %46 = arith.addf %21, %45 : vector<16x32xf32>
    %47 = vector.extract_strided_slice %10 {offsets = [0, 8], sizes = [16, 8], strides = [1, 1]} : vector<16x32xf32> to vector<16x8xf32>
    %48 = vector.shape_cast %47 : vector<16x8xf32> to vector<2x8x8xf32>
    %49 = vector.extract_strided_slice %15 {offsets = [0, 8], sizes = [16, 8], strides = [1, 1]} : vector<16x32xf32> to vector<16x8xf32>
    %50 = vector.shape_cast %49 : vector<16x8xf32> to vector<2x8x8xf32>
    %51 = vector.extract_strided_slice %20 {offsets = [0, 8], sizes = [16, 8], strides = [1, 1]} : vector<16x32xf32> to vector<16x8xf32>
    %52 = vector.shape_cast %51 : vector<16x8xf32> to vector<2x8x8xf32>
    "tpu.trace_start"() <{level = 10 : i32, message = "bqd,bkd->bqk"}> : () -> ()
    %cst_34 = arith.constant dense<0.000000e+00> : vector<2x8x8xf32>
    %53 = tpu.matmul %48, %50, %cst_34 {dimension_numbers = #tpu.dot_dimension_numbers<[2], [2], [1], [1], [0, 0, 0, 1, 1, 1], [0], [0]>} : vector<2x8x8xf32>, vector<2x8x8xf32>, vector<2x8x8xf32> -> vector<2x8x8xf32>
    "tpu.trace_stop"() : () -> ()
    %cst_35 = arith.constant dense<0xFF800000> : vector<2x8xf32>
    %54 = vector.multi_reduction <maximumf>, %53, %cst_35 [2] : vector<2x8x8xf32> to vector<2x8xf32>
    %55 = vector.shape_cast %54 : vector<2x8xf32> to vector<2x8x1xf32>
    %56 = vector.broadcast %55 : vector<2x8x1xf32> to vector<2x8x8xf32>
    %57 = arith.subf %53, %56 : vector<2x8x8xf32>
    %58 = math.exp %57 : vector<2x8x8xf32>
    %cst_36 = arith.constant dense<0.000000e+00> : vector<2x8xf32>
    %59 = vector.multi_reduction <add>, %58, %cst_36 [2] : vector<2x8x8xf32> to vector<2x8xf32>
    %60 = vector.shape_cast %59 : vector<2x8xf32> to vector<2x8x1xf32>
    %61 = tpu.reciprocal %60 : vector<2x8x1xf32> -> vector<2x8x1xf32>
    %62 = vector.broadcast %61 : vector<2x8x1xf32> to vector<2x8x8xf32>
    %63 = arith.mulf %58, %62 : vector<2x8x8xf32>
    %c0_37 = arith.constant 0 : index
    %c1 = arith.constant 1 : index
    %c0_38 = arith.constant 0 : index
    %c0_39 = arith.constant 0 : index
    %64 = vector.load %arg14[%c0_37, %c1, %c0_38, %c0_39] : memref<2x4x8x8xf32, #tpu.memory_space<vmem>>, vector<2x1x8x8xf32>
    %65 = vector.shape_cast %64 : vector<2x1x8x8xf32> to vector<2x8x8xf32>
    %66 = vector.shape_cast %63 : vector<2x8x8xf32> to vector<2x1x8x8xf32>
    tpu.vector_store %arg14[%c0_37, %c1, %c0_38, %c0_39], %66 {strides = array<i32>} : memref<2x4x8x8xf32, #tpu.memory_space<vmem>>, vector<2x1x8x8xf32>,
    "tpu.trace_start"() <{level = 10 : i32, message = "bqk,bkd->bqd"}> : () -> ()
    %cst_40 = arith.constant dense<0.000000e+00> : vector<2x8x8xf32>
    %67 = tpu.matmul %63, %52, %cst_40 {dimension_numbers = #tpu.dot_dimension_numbers<[2], [1], [1], [2], [0, 0, 0, 1, 1, 2], [0], [0]>} : vector<2x8x8xf32>, vector<2x8x8xf32>, vector<2x8x8xf32> -> vector<2x8x8xf32>
    "tpu.trace_stop"() : () -> ()
    %68 = vector.shape_cast %67 : vector<2x8x8xf32> to vector<16x8xf32>
    %c8 = arith.constant 8 : index
    %c0_41 = arith.constant 0 : index
    %69 = vector.load %arg11[%c8, %c0_41] : memref<32x32xf32, #tpu.memory_space<vmem>>, vector<8x32xf32>
    %cst_42 = arith.constant dense<0.000000e+00> : vector<16x32xf32>
    %70 = tpu.matmul %68, %69, %cst_42 {dimension_numbers = #tpu.dot_dimension_numbers<[1], [0], [0], [1], [0, 0, 1, 1], [], []>} : vector<16x8xf32>, vector<8x32xf32>, vector<16x32xf32> -> vector<16x32xf32>
    %71 = arith.addf %46, %70 : vector<16x32xf32>
    %72 = vector.extract_strided_slice %10 {offsets = [0, 16], sizes = [16, 8], strides = [1, 1]} : vector<16x32xf32> to vector<16x8xf32>
    %73 = vector.shape_cast %72 : vector<16x8xf32> to vector<2x8x8xf32>
    %74 = vector.extract_strided_slice %15 {offsets = [0, 16], sizes = [16, 8], strides = [1, 1]} : vector<16x32xf32> to vector<16x8xf32>
    %75 = vector.shape_cast %74 : vector<16x8xf32> to vector<2x8x8xf32>
    %76 = vector.extract_strided_slice %20 {offsets = [0, 16], sizes = [16, 8], strides = [1, 1]} : vector<16x32xf32> to vector<16x8xf32>
    %77 = vector.shape_cast %76 : vector<16x8xf32> to vector<2x8x8xf32>
    "tpu.trace_start"() <{level = 10 : i32, message = "bqd,bkd->bqk"}> : () -> ()
    %cst_43 = arith.constant dense<0.000000e+00> : vector<2x8x8xf32>
    %78 = tpu.matmul %73, %75, %cst_43 {dimension_numbers = #tpu.dot_dimension_numbers<[2], [2], [1], [1], [0, 0, 0, 1, 1, 1], [0], [0]>} : vector<2x8x8xf32>, vector<2x8x8xf32>, vector<2x8x8xf32> -> vector<2x8x8xf32>
    "tpu.trace_stop"() : () -> ()
    %cst_44 = arith.constant dense<0xFF800000> : vector<2x8xf32>
    %79 = vector.multi_reduction <maximumf>, %78, %cst_44 [2] : vector<2x8x8xf32> to vector<2x8xf32>
    %80 = vector.shape_cast %79 : vector<2x8xf32> to vector<2x8x1xf32>
    %81 = vector.broadcast %80 : vector<2x8x1xf32> to vector<2x8x8xf32>
    %82 = arith.subf %78, %81 : vector<2x8x8xf32>
    %83 = math.exp %82 : vector<2x8x8xf32>
    %cst_45 = arith.constant dense<0.000000e+00> : vector<2x8xf32>
    %84 = vector.multi_reduction <add>, %83, %cst_45 [2] : vector<2x8x8xf32> to vector<2x8xf32>
    %85 = vector.shape_cast %84 : vector<2x8xf32> to vector<2x8x1xf32>
    %86 = tpu.reciprocal %85 : vector<2x8x1xf32> -> vector<2x8x1xf32>
    %87 = vector.broadcast %86 : vector<2x8x1xf32> to vector<2x8x8xf32>
    %88 = arith.mulf %83, %87 : vector<2x8x8xf32>
    %c0_46 = arith.constant 0 : index
    %c2 = arith.constant 2 : index
    %c0_47 = arith.constant 0 : index
    %c0_48 = arith.constant 0 : index
    %89 = vector.load %arg14[%c0_46, %c2, %c0_47, %c0_48] : memref<2x4x8x8xf32, #tpu.memory_space<vmem>>, vector<2x1x8x8xf32>
    %90 = vector.shape_cast %89 : vector<2x1x8x8xf32> to vector<2x8x8xf32>
    %91 = vector.shape_cast %88 : vector<2x8x8xf32> to vector<2x1x8x8xf32>
    tpu.vector_store %arg14[%c0_46, %c2, %c0_47, %c0_48], %91 {strides = array<i32>} : memref<2x4x8x8xf32, #tpu.memory_space<vmem>>, vector<2x1x8x8xf32>,
    "tpu.trace_start"() <{level = 10 : i32, message = "bqk,bkd->bqd"}> : () -> ()
    %cst_49 = arith.constant dense<0.000000e+00> : vector<2x8x8xf32>
    %92 = tpu.matmul %88, %77, %cst_49 {dimension_numbers = #tpu.dot_dimension_numbers<[2], [1], [1], [2], [0, 0, 0, 1, 1, 2], [0], [0]>} : vector<2x8x8xf32>, vector<2x8x8xf32>, vector<2x8x8xf32> -> vector<2x8x8xf32>
    "tpu.trace_stop"() : () -> ()
    %93 = vector.shape_cast %92 : vector<2x8x8xf32> to vector<16x8xf32>
    %c16 = arith.constant 16 : index
    %c0_50 = arith.constant 0 : index
    %94 = vector.load %arg11[%c16, %c0_50] : memref<32x32xf32, #tpu.memory_space<vmem>>, vector<8x32xf32>
    %cst_51 = arith.constant dense<0.000000e+00> : vector<16x32xf32>
    %95 = tpu.matmul %93, %94, %cst_51 {dimension_numbers = #tpu.dot_dimension_numbers<[1], [0], [0], [1], [0, 0, 1, 1], [], []>} : vector<16x8xf32>, vector<8x32xf32>, vector<16x32xf32> -> vector<16x32xf32>
    %96 = arith.addf %71, %95 : vector<16x32xf32>
    %97 = vector.extract_strided_slice %10 {offsets = [0, 24], sizes = [16, 8], strides = [1, 1]} : vector<16x32xf32> to vector<16x8xf32>
    %98 = vector.shape_cast %97 : vector<16x8xf32> to vector<2x8x8xf32>
    %99 = vector.extract_strided_slice %15 {offsets = [0, 24], sizes = [16, 8], strides = [1, 1]} : vector<16x32xf32> to vector<16x8xf32>
    %100 = vector.shape_cast %99 : vector<16x8xf32> to vector<2x8x8xf32>
    %101 = vector.extract_strided_slice %20 {offsets = [0, 24], sizes = [16, 8], strides = [1, 1]} : vector<16x32xf32> to vector<16x8xf32>
    %102 = vector.shape_cast %101 : vector<16x8xf32> to vector<2x8x8xf32>
    "tpu.trace_start"() <{level = 10 : i32, message = "bqd,bkd->bqk"}> : () -> ()
    %cst_52 = arith.constant dense<0.000000e+00> : vector<2x8x8xf32>
    %103 = tpu.matmul %98, %100, %cst_52 {dimension_numbers = #tpu.dot_dimension_numbers<[2], [2], [1], [1], [0, 0, 0, 1, 1, 1], [0], [0]>} : vector<2x8x8xf32>, vector<2x8x8xf32>, vector<2x8x8xf32> -> vector<2x8x8xf32>
    "tpu.trace_stop"() : () -> ()
    %cst_53 = arith.constant dense<0xFF800000> : vector<2x8xf32>
    %104 = vector.multi_reduction <maximumf>, %103, %cst_53 [2] : vector<2x8x8xf32> to vector<2x8xf32>
    %105 = vector.shape_cast %104 : vector<2x8xf32> to vector<2x8x1xf32>
    %106 = vector.broadcast %105 : vector<2x8x1xf32> to vector<2x8x8xf32>
    %107 = arith.subf %103, %106 : vector<2x8x8xf32>
    %108 = math.exp %107 : vector<2x8x8xf32>
    %cst_54 = arith.constant dense<0.000000e+00> : vector<2x8xf32>
    %109 = vector.multi_reduction <add>, %108, %cst_54 [2] : vector<2x8x8xf32> to vector<2x8xf32>
    %110 = vector.shape_cast %109 : vector<2x8xf32> to vector<2x8x1xf32>
    %111 = tpu.reciprocal %110 : vector<2x8x1xf32> -> vector<2x8x1xf32>
    %112 = vector.broadcast %111 : vector<2x8x1xf32> to vector<2x8x8xf32>
    %113 = arith.mulf %108, %112 : vector<2x8x8xf32>
    %c0_55 = arith.constant 0 : index
    %c3 = arith.constant 3 : index
    %c0_56 = arith.constant 0 : index
    %c0_57 = arith.constant 0 : index
    %114 = vector.load %arg14[%c0_55, %c3, %c0_56, %c0_57] : memref<2x4x8x8xf32, #tpu.memory_space<vmem>>, vector<2x1x8x8xf32>
    %115 = vector.shape_cast %114 : vector<2x1x8x8xf32> to vector<2x8x8xf32>
    %116 = vector.shape_cast %113 : vector<2x8x8xf32> to vector<2x1x8x8xf32>
    tpu.vector_store %arg14[%c0_55, %c3, %c0_56, %c0_57], %116 {strides = array<i32>} : memref<2x4x8x8xf32, #tpu.memory_space<vmem>>, vector<2x1x8x8xf32>,
    "tpu.trace_start"() <{level = 10 : i32, message = "bqk,bkd->bqd"}> : () -> ()
    %cst_58 = arith.constant dense<0.000000e+00> : vector<2x8x8xf32>
    %117 = tpu.matmul %113, %102, %cst_58 {dimension_numbers = #tpu.dot_dimension_numbers<[2], [1], [1], [2], [0, 0, 0, 1, 1, 2], [0], [0]>} : vector<2x8x8xf32>, vector<2x8x8xf32>, vector<2x8x8xf32> -> vector<2x8x8xf32>
    "tpu.trace_stop"() : () -> ()
    %118 = vector.shape_cast %117 : vector<2x8x8xf32> to vector<16x8xf32>
    %c24 = arith.constant 24 : index
    %c0_59 = arith.constant 0 : index
    %119 = vector.load %arg11[%c24, %c0_59] : memref<32x32xf32, #tpu.memory_space<vmem>>, vector<8x32xf32>
    %cst_60 = arith.constant dense<0.000000e+00> : vector<16x32xf32>
    %120 = tpu.matmul %118, %119, %cst_60 {dimension_numbers = #tpu.dot_dimension_numbers<[1], [0], [0], [1], [0, 0, 1, 1], [], []>} : vector<16x8xf32>, vector<8x32xf32>, vector<16x32xf32> -> vector<16x32xf32>
    %121 = arith.addf %96, %120 : vector<16x32xf32>
    %c0_61 = arith.constant 0 : index
    %c0_62 = arith.constant 0 : index
    %122 = vector.load %arg12[%c0_61, %c0_62] : memref<1x32xf32, #tpu.memory_space<vmem>>, vector<1x32xf32>
    %123 = vector.broadcast %122 : vector<1x32xf32> to vector<16x32xf32>
    %124 = arith.addf %121, %123 : vector<16x32xf32>
    %125 = vector.shape_cast %124 : vector<16x32xf32> to vector<2x8x32xf32>
    %c0_63 = arith.constant 0 : index
    %c0_64 = arith.constant 0 : index
    %c0_65 = arith.constant 0 : index
    %126 = vector.load %arg13[%c0_63, %c0_64, %c0_65] : memref<2x8x32xf32, #tpu.memory_space<vmem>>, vector<2x8x32xf32>
    tpu.vector_store %arg13[%c0_63, %c0_64, %c0_65], %125 {strides = array<i32>} : memref<2x8x32xf32, #tpu.memory_space<vmem>>, vector<2x8x32xf32>,
    return
  }
  func.func @transform_0(%arg0: i32, %arg1: i32) -> (i32, i32, i32) {
    %c0_i32 = arith.constant 0 : i32
    %c0_i32_0 = arith.constant 0 : i32
    return %arg0, %arg1, %c0_i32 : i32, i32, i32
  }
  func.func @transform_1(%arg0: i32, %arg1: i32) -> (i32, i32, i32) {
    %c0_i32 = arith.constant 0 : i32
    %c0_i32_0 = arith.constant 0 : i32
    %c0_i32_1 = arith.constant 0 : i32
    return %arg0, %c0_i32, %c0_i32_0 : i32, i32, i32
  }
  func.func @transform_2(%arg0: i32, %arg1: i32) -> (i32, i32, i32) {
    %c0_i32 = arith.constant 0 : i32
    %c0_i32_0 = arith.constant 0 : i32
    %c0_i32_1 = arith.constant 0 : i32
    return %arg0, %c0_i32, %c0_i32_0 : i32, i32, i32
  }
  func.func @transform_3(%arg0: i32, %arg1: i32) -> (i32, i32) {
    %c0_i32 = arith.constant 0 : i32
    %c0_i32_0 = arith.constant 0 : i32
    %c0_i32_1 = arith.constant 0 : i32
    return %c0_i32, %c0_i32_0 : i32, i32
  }
  func.func @transform_4(%arg0: i32, %arg1: i32) -> (i32, i32) {
    %c0_i32 = arith.constant 0 : i32
    %c0_i32_0 = arith.constant 0 : i32
    %c0_i32_1 = arith.constant 0 : i32
    return %c0_i32, %c0_i32_0 : i32, i32
  }
  func.func @transform_5(%arg0: i32, %arg1: i32) -> (i32, i32) {
    %c0_i32 = arith.constant 0 : i32
    %c0_i32_0 = arith.constant 0 : i32
    %c0_i32_1 = arith.constant 0 : i32
    return %c0_i32, %c0_i32_0 : i32, i32
  }
  func.func @transform_6(%arg0: i32, %arg1: i32) -> (i32, i32) {
    %c0_i32 = arith.constant 0 : i32
    %c0_i32_0 = arith.constant 0 : i32
    %c0_i32_1 = arith.constant 0 : i32
    return %c0_i32, %c0_i32_0 : i32, i32
  }
  func.func @transform_7(%arg0: i32, %arg1: i32) -> (i32, i32) {
    %c0_i32 = arith.constant 0 : i32
    %c0_i32_0 = arith.constant 0 : i32
    %c0_i32_1 = arith.constant 0 : i32
    return %c0_i32, %c0_i32_0 : i32, i32
  }
  func.func @transform_8(%arg0: i32, %arg1: i32) -> (i32, i32) {
    %c0_i32 = arith.constant 0 : i32
    %c0_i32_0 = arith.constant 0 : i32
    %c0_i32_1 = arith.constant 0 : i32
    return %c0_i32, %c0_i32_0 : i32, i32
  }
  func.func @transform_9(%arg0: i32, %arg1: i32) -> (i32, i32) {
    %c0_i32 = arith.constant 0 : i32
    %c0_i32_0 = arith.constant 0 : i32
    %c0_i32_1 = arith.constant 0 : i32
    return %c0_i32, %c0_i32_0 : i32, i32
  }
  func.func @transform_10(%arg0: i32, %arg1: i32) -> (i32, i32) {
    %c0_i32 = arith.constant 0 : i32
    %c0_i32_0 = arith.constant 0 : i32
    %c0_i32_1 = arith.constant 0 : i32
    return %c0_i32, %c0_i32_0 : i32, i32
  }
  func.func @transform_11(%arg0: i32, %arg1: i32) -> (i32, i32, i32) {
    %c0_i32 = arith.constant 0 : i32
    %c0_i32_0 = arith.constant 0 : i32
    return %arg0, %arg1, %c0_i32 : i32, i32, i32
  }
  func.func @transform_12(%arg0: i32, %arg1: i32) -> (i32, i32, i32, i32) {
    %c0_i32 = arith.constant 0 : i32
    %c0_i32_0 = arith.constant 0 : i32
    %c0_i32_1 = arith.constant 0 : i32
    return %arg0, %c0_i32, %arg1, %c0_i32_0 : i32, i32, i32, i32
  }
}

</mosaic_0001>

<llo_original>
// kernel: tpu_custom_call.1
$region0: #{tpu_custom_call.1}
  #allocation0 [shape = 'u32[]', space=smem, size = 0x4, offset = 0x4, fixed_abs, tag = 'smem constant byte address 0x4 - core index']
  #allocation1 [shape = 'u32[144,128]{1,0:T(1,128)}', space=vmem, size = 0x12000, scoped, tag = 'internal scratch']
  %s0 = inlined_call_operand.hbm [shape: f32[2,8,32], index: 0, kind: input, shape index: {}]
  %s1 = inlined_call_operand.hbm [shape: f32[2,8,32], index: 1, kind: input, shape index: {}]
  %s2 = inlined_call_operand.hbm [shape: f32[2,8,32], index: 2, kind: input, shape index: {}]
  %s3 = inlined_call_operand.hbm [shape: f32[32,32], index: 3, kind: input, shape index: {}]
  %s4 = inlined_call_operand.vmem [shape: f32[1,32], index: 4, kind: input, shape index: {}]
  %s5 = inlined_call_operand.hbm [shape: f32[32,32], index: 5, kind: input, shape index: {}]
  %s6 = inlined_call_operand.vmem [shape: f32[1,32], index: 6, kind: input, shape index: {}]
  %s7 = inlined_call_operand.hbm [shape: f32[32,32], index: 7, kind: input, shape index: {}]
  %s8 = inlined_call_operand.hbm [shape: f32[1,32], index: 8, kind: input, shape index: {}]
  %s9 = inlined_call_operand.vmem [shape: f32[32,32], index: 9, kind: input, shape index: {}]
  %s10 = inlined_call_operand.vmem [shape: f32[1,32], index: 10, kind: input, shape index: {}]
  %s11 = inlined_call_operand.hbm [shape: f32[2,8,32], index: 11, kind: output, shape index: {0}]
  %s12 = inlined_call_operand.hbm [shape: f32[2,4,8,8], index: 12, kind: output, shape index: {1}]
  %13 = xla_tuple %s11, %s12
  %s14 = sld [smem:[#allocation0]]
  $region90: #{tpu_custom_call.1} parent=0
    _
  %s16 = ssub.s32 1, %s14
  %s17 = scalar_select 0, %s16, %s14
  $region1: #{tpu_custom_call.1} parent=0
    #allocation2 [shape = 'u8[8192]{0}', space=vmem, size = 0x2000, scoped, tag = 'input window, operand 0, single buffered']
    #allocation3 [shape = 's32[1]{0}', space=sflag, size = 0x4, scoped, tag = 'scoped memory for tpu_custom_call.1']
    #allocation4 [shape = 's32[1]{0}', space=sflag, size = 0x4, scoped, tag = 'scoped memory for tpu_custom_call.1']
    #allocation5 [shape = 'u8[8192]{0}', space=vmem, size = 0x2000, scoped, tag = 'input window, operand 1, single buffered']
    #allocation6 [shape = 's32[1]{0}', space=sflag, size = 0x4, scoped, tag = 'scoped memory for tpu_custom_call.1']
    #allocation7 [shape = 'u8[8192]{0}', space=vmem, size = 0x2000, scoped, tag = 'input window, operand 2, single buffered']
    #allocation8 [shape = 'u8[16384]{0}', space=vmem, size = 0x4000, scoped, tag = 'input window, operand 3, single buffered']
    #allocation9 [shape = 's32[1]{0}', space=sflag, size = 0x4, scoped, tag = 'scoped memory for tpu_custom_call.1']
    #allocation10 [shape = 'u8[16384]{0}', space=vmem, size = 0x4000, scoped, tag = 'input window, operand 5, single buffered']
    #allocation11 [shape = 'u8[16384]{0}', space=vmem, size = 0x4000, scoped, tag = 'input window, operand 7, single buffered']
    #allocation12 [shape = 's32[1]{0}', space=sflag, size = 0x4, scoped, tag = 'scoped memory for tpu_custom_call.1']
    #allocation13 [shape = 'u8[512]{0}', space=vmem, size = 0x400, scoped, tag = 'input window, operand 8, single buffered']
    #allocation14 [shape = 'u8[8192]{0}', space=vmem, size = 0x2000, scoped, tag = 'output window, operand 0, single buffered']
    #allocation15 [shape = 'u8[32768]{0}', space=vmem, size = 0x8000, scoped, tag = 'output window, operand 1, single buffered']
    #allocation16 [shape = 's32[1]{0}', space=sflag, size = 0x4, scoped, tag = 'scoped memory for tpu_custom_call.1']
    %18 = vsyncpa [#allocation3], 0
    %19 = vsyncpa [#allocation6], 0
    %20 = vsyncpa [#allocation9], 0
    %21 = vsyncpa [#allocation12], 0
    %22 = vsyncpa [#allocation4], 0
    %23 = vsyncpa [#allocation16], 0
    // Predicated region
    $region2: #{tpu_custom_call.1} parent=1 // pred_check
      _
    $region3: #{tpu_custom_call.1} parent=1 // pred_check_branch
      %25 = sbr.rel (0) target = $region5
    $region4: #{tpu_custom_call.1} parent=1 // pred_region
      %s27 = ssub.s32 256, 256
      %28 = vsyncadd [#allocation3], %s27
      %s29 = sshll.u32 [#allocation2], 4
      %s30 = int_to_ptr.vmem [resolvable:$true] %s29
      %35 = dma.hbm_to_vmem [thread:$0]  %s0, 256, %s30, [#allocation3], 128, 128, 8
    $region5: #{tpu_custom_call.1} parent=1 // pred_fallthru
      _
    // Predicated region
    $region6: #{tpu_custom_call.1} parent=1 // pred_check
      _
    $region7: #{tpu_custom_call.1} parent=1 // pred_check_branch
      %37 = sbr.rel (0) target = $region9
    $region8: #{tpu_custom_call.1} parent=1 // pred_region
      %s39 = ssub.s32 256, 256
      %40 = vsyncadd [#allocation6], %s39
      %s41 = sshll.u32 [#allocation5], 4
      %s42 = int_to_ptr.vmem [resolvable:$true] %s41
      %47 = dma.hbm_to_vmem [thread:$0]  %s1, 256, %s42, [#allocation6], 128, 128, 8
    $region9: #{tpu_custom_call.1} parent=1 // pred_fallthru
      _
    // Predicated region
    $region10: #{tpu_custom_call.1} parent=1 // pred_check
      _
    $region11: #{tpu_custom_call.1} parent=1 // pred_check_branch
      %49 = sbr.rel (0) target = $region13
    $region12: #{tpu_custom_call.1} parent=1 // pred_region
      %s51 = ssub.s32 256, 256
      %52 = vsyncadd [#allocation6], %s51
      %s53 = sshll.u32 [#allocation7], 4
      %s54 = int_to_ptr.vmem [resolvable:$true] %s53
      %59 = dma.hbm_to_vmem [thread:$0]  %s2, 256, %s54, [#allocation6], 128, 128, 8
    $region13: #{tpu_custom_call.1} parent=1 // pred_fallthru
      _
    // Predicated region
    $region14: #{tpu_custom_call.1} parent=1 // pred_check
      _
    $region15: #{tpu_custom_call.1} parent=1 // pred_check_branch
      %61 = sbr.rel (0) target = $region17
    $region16: #{tpu_custom_call.1} parent=1 // pred_region
      %s63 = ssub.s32 512, 512
      %64 = vsyncadd [#allocation9], %s63
      %s65 = sshll.u32 [#allocation8], 4
      %s66 = int_to_ptr.vmem [resolvable:$true] %s65
      %71 = dma.hbm_to_vmem [thread:$0]  %s3, 512, %s66, [#allocation9], 128, 128, 8
    $region17: #{tpu_custom_call.1} parent=1 // pred_fallthru
      _
    // Predicated region
    $region18: #{tpu_custom_call.1} parent=1 // pred_check
      _
    $region19: #{tpu_custom_call.1} parent=1 // pred_check_branch
      %73 = sbr.rel (0) target = $region21
    $region20: #{tpu_custom_call.1} parent=1 // pred_region
      _
    $region21: #{tpu_custom_call.1} parent=1 // pred_fallthru
      _
    // Predicated region
    $region22: #{tpu_custom_call.1} parent=1 // pred_check
      _
    $region23: #{tpu_custom_call.1} parent=1 // pred_check_branch
      %75 = sbr.rel (0) target = $region25
    $region24: #{tpu_custom_call.1} parent=1 // pred_region
      %s77 = ssub.s32 512, 512
      %78 = vsyncadd [#allocation9], %s77
      %s79 = sshll.u32 [#allocation10], 4
      %s80 = int_to_ptr.vmem [resolvable:$true] %s79
      %85 = dma.hbm_to_vmem [thread:$0]  %s5, 512, %s80, [#allocation9], 128, 128, 8
    $region25: #{tpu_custom_call.1} parent=1 // pred_fallthru
      _
    // Predicated region
    $region26: #{tpu_custom_call.1} parent=1 // pred_check
      _
    $region27: #{tpu_custom_call.1} parent=1 // pred_check_branch
      %87 = sbr.rel (0) target = $region29
    $region28: #{tpu_custom_call.1} parent=1 // pred_region
      _
    $region29: #{tpu_custom_call.1} parent=1 // pred_fallthru
      _
    // Predicated region
    $region30: #{tpu_custom_call.1} parent=1 // pred_check
      _
    $region31: #{tpu_custom_call.1} parent=1 // pred_check_branch
      %89 = sbr.rel (0) target = $region33
    $region32: #{tpu_custom_call.1} parent=1 // pred_region
      %s91 = ssub.s32 512, 512
      %92 = vsyncadd [#allocation12], %s91
      %s93 = sshll.u32 [#allocation11], 4
      %s94 = int_to_ptr.vmem [resolvable:$true] %s93
      %99 = dma.hbm_to_vmem [thread:$0]  %s7, 512, %s94, [#allocation12], 128, 128, 8
    $region33: #{tpu_custom_call.1} parent=1 // pred_fallthru
      _
    // Predicated region
    $region34: #{tpu_custom_call.1} parent=1 // pred_check
      _
    $region35: #{tpu_custom_call.1} parent=1 // pred_check_branch
      %101 = sbr.rel (0) target = $region37
    $region36: #{tpu_custom_call.1} parent=1 // pred_region
      %s103 = ssub.s32 16, 16
      %104 = vsyncadd [#allocation12], %s103
      %s106 = sshll.u32 [#allocation13], 4
      %s107 = int_to_ptr.vmem [resolvable:$true] %s106
      %109 = dma.hbm_to_vmem [thread:$0]  %s8, 16, %s107, [#allocation12]
    $region37: #{tpu_custom_call.1} parent=1 // pred_fallthru
      _
    // Predicated region
    $region38: #{tpu_custom_call.1} parent=1 // pred_check
      _
    $region39: #{tpu_custom_call.1} parent=1 // pred_check_branch
      %111 = sbr.rel (0) target = $region41
    $region40: #{tpu_custom_call.1} parent=1 // pred_region
      _
    $region41: #{tpu_custom_call.1} parent=1 // pred_fallthru
      _
    // Predicated region
    $region42: #{tpu_custom_call.1} parent=1 // pred_check
      _
    $region43: #{tpu_custom_call.1} parent=1 // pred_check_branch
      %113 = sbr.rel (0) target = $region45
    $region44: #{tpu_custom_call.1} parent=1 // pred_region
      _
    $region45: #{tpu_custom_call.1} parent=1 // pred_fallthru
      _
    // Predicated region
    $region46: #{tpu_custom_call.1} parent=1 // pred_check
      _
    $region47: #{tpu_custom_call.1} parent=1 // pred_check_branch
      %115 = sbr.rel (0) target = $region49
    $region48: #{tpu_custom_call.1} parent=1 // pred_region
      %116 = dma.done [#allocation3], 256
    $region49: #{tpu_custom_call.1} parent=1 // pred_fallthru
      _
    // Predicated region
    $region50: #{tpu_custom_call.1} parent=1 // pred_check
      _
    $region51: #{tpu_custom_call.1} parent=1 // pred_check_branch
      %118 = sbr.rel (0) target = $region53
    $region52: #{tpu_custom_call.1} parent=1 // pred_region
      %119 = dma.done [#allocation6], 256
    $region53: #{tpu_custom_call.1} parent=1 // pred_fallthru
      _
    // Predicated region
    $region54: #{tpu_custom_call.1} parent=1 // pred_check
      _
    $region55: #{tpu_custom_call.1} parent=1 // pred_check_branch
      %121 = sbr.rel (0) target = $region57
    $region56: #{tpu_custom_call.1} parent=1 // pred_region
      %122 = dma.done [#allocation6], 256
    $region57: #{tpu_custom_call.1} parent=1 // pred_fallthru
      _
    // Predicated region
    $region58: #{tpu_custom_call.1} parent=1 // pred_check
      _
    $region59: #{tpu_custom_call.1} parent=1 // pred_check_branch
      %124 = sbr.rel (0) target = $region61
    $region60: #{tpu_custom_call.1} parent=1 // pred_region
      %125 = dma.done [#allocation9], 512
    $region61: #{tpu_custom_call.1} parent=1 // pred_fallthru
      _
    // Predicated region
    $region62: #{tpu_custom_call.1} parent=1 // pred_check
      _
    $region63: #{tpu_custom_call.1} parent=1 // pred_check_branch
      %127 = sbr.rel (0) target = $region65
    $region64: #{tpu_custom_call.1} parent=1 // pred_region
      %128 = dma.done [#allocation9], 512
    $region65: #{tpu_custom_call.1} parent=1 // pred_fallthru
      _
    // Predicated region
    $region66: #{tpu_custom_call.1} parent=1 // pred_check
      _
    $region67: #{tpu_custom_call.1} parent=1 // pred_check_branch
      %130 = sbr.rel (0) target = $region69
    $region68: #{tpu_custom_call.1} parent=1 // pred_region
      %131 = dma.done [#allocation12], 512
    $region69: #{tpu_custom_call.1} parent=1 // pred_fallthru
      _
    // Predicated region
    $region70: #{tpu_custom_call.1} parent=1 // pred_check
      _
    $region71: #{tpu_custom_call.1} parent=1 // pred_check_branch
      %133 = sbr.rel (0) target = $region73
    $region72: #{tpu_custom_call.1} parent=1 // pred_region
      %134 = dma.done [#allocation12], 16
    $region73: #{tpu_custom_call.1} parent=1 // pred_fallthru
      _
    %v135 = vld [vmem:[#allocation2] sm:$0xff]
    %v136 = vld [vmem:[#allocation2 + $0x8] sm:$0xff]
    %v137 = vld [vmem:[#allocation5] sm:$0xff]
    %v138 = vld [vmem:[#allocation5 + $0x8] sm:$0xff]
    %v139 = vld [vmem:[#allocation7] sm:$0xff]
    %v140 = vld [vmem:[#allocation7 + $0x8] sm:$0xff]
    %v141 = vld [vmem:[#allocation8] sm:$0xff]
    %v142 = vld [vmem:[#allocation8 + $0x8] sm:$0xff]
    %v143 = vld [vmem:[#allocation8 + $0x10] sm:$0xff]
    %v144 = vld [vmem:[#allocation8 + $0x18] sm:$0xff]
    %v145 = vld [vmem:[%s4] sm:$0x1]
    %v147 = vlaneseq
    %v148 = vshrl.u32 %v147, 7
    %v149 = vsub.s32 0, %v148
    %v150 = vrot.slane %v145, %v149
    %vm152 = vcmask 261120
    %v154 = vsel %vm152, %v135, 0
    %v157 = vsel %vm152, %v136, 0
    %159 = vmatprep.subr.mxu0 0.0
    %160 = vmatpush1.msra.mxu0 %v141
    %161 = vmatprep.subr.mxu0 0.0
    %162 = vmatpush1.msra.mxu0 %v142
    %163 = vmatprep.subr.mxu0 0.0
    %164 = vmatpush1.msra.mxu0 %v143
    %165 = vmatprep.subr.mxu0 0.0
    %166 = vmatpush1.msra.mxu0 %v144
    %167 = vmatprep.subr.mxu0 0.0
    %168 = vmatpush1.msra.mxu0 0.0
    %169 = vmatprep.subr.mxu0 0.0
    %170 = vmatpush1.msra.mxu0 0.0
    %171 = vmatprep.subr.mxu0 0.0
    %172 = vmatpush1.msra.mxu0 0.0
    %173 = vmatprep.subr.mxu0 0.0
    %174 = vmatpush1.msra.mxu0 0.0
    %175 = vmatprep.subr.mxu0 0.0
    %176 = vmatpush1.msra.mxu0 0.0
    %177 = vmatprep.subr.mxu0 0.0
    %178 = vmatpush1.msra.mxu0 0.0
    %179 = vmatprep.subr.mxu0 0.0
    %180 = vmatpush1.msra.mxu0 0.0
    %181 = vmatprep.subr.mxu0 0.0
    %182 = vmatpush1.msra.mxu0 0.0
    %183 = vmatprep.subr.mxu0 0.0
    %184 = vmatpush1.msra.mxu0 0.0
    %185 = vmatprep.subr.mxu0 0.0
    %186 = vmatpush1.msra.mxu0 0.0
    %187 = vmatprep.subr.mxu0 0.0
    %188 = vmatpush1.msra.mxu0 0.0
    %189 = vmatprep.subr.mxu0 0.0
    %190 = vmatpush1.msra.mxu0 0.0
    %191 = vmatprep.subr.mxu0 0.0
    %192 = vmatpush1.msra.mxu0 0.0
    %193 = vmatprep.subr.mxu0 0.0
    %194 = vmatpush1.msra.mxu0 0.0
    %195 = vmatprep.subr.mxu0 0.0
    %196 = vmatpush1.msra.mxu0 0.0
    %197 = vmatprep.subr.mxu0 0.0
    %198 = vmatpush1.msra.mxu0 0.0
    %199 = vmatprep.subr.mxu0 0.0
    %200 = vmatpush1.msra.mxu0 0.0
    %201 = vmatprep.subr.mxu0 0.0
    %202 = vmatpush1.msra.mxu0 0.0
    %203 = vmatprep.subr.mxu0 0.0
    %204 = vmatpush1.msra.mxu0 0.0
    %205 = vmatprep.subr.mxu0 0.0
    %206 = vmatpush1.msra.mxu0 0.0
    %207 = vmatprep.subr.mxu0 0.0
    %208 = vmatpush1.msra.mxu0 0.0
    %209 = vmatprep.subr.mxu0 0.0
    %210 = vmatpush1.msra.mxu0 0.0
    %211 = vmatprep.subr.mxu0 0.0
    %212 = vmatpush1.msra.mxu0 0.0
    %213 = vmatprep.subr.mxu0 0.0
    %214 = vmatpush1.msra.mxu0 0.0
    %215 = vmatprep.subr.mxu0 0.0
    %216 = vmatpush1.msra.mxu0 0.0
    %217 = vmatprep.subr.mxu0 0.0
    %218 = vmatpush1.msra.mxu0 0.0
    %219 = vmatprep.subr.mxu0 0.0
    %220 = vmatpush1.msra.mxu0 0.0
    %221 = vmatprep.subr.mxu0 0.0
    %222 = vmatpush1.msra.mxu0 0.0
    %223 = vmatprep.mubr.f32.mxu0 0.0
    %224 = vmatmul.mubr.f32.gmra.mrb[0].mxu0 %v154
    %v225 = vpop.f32.mrb[0].mxu0
    %v226 = vadd.f32 %v150, %v225
    %v227 = vpop.f32.mrb[0].mxu0
    %228 = vmatprep.mubr.f32.mxu0 0.0
    %229 = vmatmul.mubr.f32.gmra.mrb[0].mxu0 %v157
    %v230 = vpop.f32.mrb[0].mxu0
    %v231 = vadd.f32 %v150, %v230
    %v232 = vpop.f32.mrb[0].mxu0
    %233 = vdwg.mxu0
    %v234 = vld [vmem:[#allocation10] sm:$0xff]
    %v235 = vld [vmem:[#allocation10 + $0x8] sm:$0xff]
    %v236 = vld [vmem:[#allocation10 + $0x10] sm:$0xff]
    %v237 = vld [vmem:[#allocation10 + $0x18] sm:$0xff]
    %v238 = vld [vmem:[%s6] sm:$0x1]
    %v240 = vlaneseq
    %v241 = vshrl.u32 %v240, 7
    %v242 = vsub.s32 0, %v241
    %v243 = vrot.slane %v238, %v242
    %v246 = vsel %vm152, %v137, 0
    %v249 = vsel %vm152, %v138, 0
    %251 = vmatprep.subr.mxu0 0.0
    %252 = vmatpush1.msra.mxu0 %v234
    %253 = vmatprep.subr.mxu0 0.0
    %254 = vmatpush1.msra.mxu0 %v235
    %255 = vmatprep.subr.mxu0 0.0
    %256 = vmatpush1.msra.mxu0 %v236
    %257 = vmatprep.subr.mxu0 0.0
    %258 = vmatpush1.msra.mxu0 %v237
    %259 = vmatprep.subr.mxu0 0.0
    %260 = vmatpush1.msra.mxu0 0.0
    %261 = vmatprep.subr.mxu0 0.0
    %262 = vmatpush1.msra.mxu0 0.0
    %263 = vmatprep.subr.mxu0 0.0
    %264 = vmatpush1.msra.mxu0 0.0
    %265 = vmatprep.subr.mxu0 0.0
    %266 = vmatpush1.msra.mxu0 0.0
    %267 = vmatprep.subr.mxu0 0.0
    %268 = vmatpush1.msra.mxu0 0.0
    %269 = vmatprep.subr.mxu0 0.0
    %270 = vmatpush1.msra.mxu0 0.0
    %271 = vmatprep.subr.mxu0 0.0
    %272 = vmatpush1.msra.mxu0 0.0
    %273 = vmatprep.subr.mxu0 0.0
    %274 = vmatpush1.msra.mxu0 0.0
    %275 = vmatprep.subr.mxu0 0.0
    %276 = vmatpush1.msra.mxu0 0.0
    %277 = vmatprep.subr.mxu0 0.0
    %278 = vmatpush1.msra.mxu0 0.0
    %279 = vmatprep.subr.mxu0 0.0
    %280 = vmatpush1.msra.mxu0 0.0
    %281 = vmatprep.subr.mxu0 0.0
    %282 = vmatpush1.msra.mxu0 0.0
    %283 = vmatprep.subr.mxu0 0.0
    %284 = vmatpush1.msra.mxu0 0.0
    %285 = vmatprep.subr.mxu0 0.0
    %286 = vmatpush1.msra.mxu0 0.0
    %287 = vmatprep.subr.mxu0 0.0
    %288 = vmatpush1.msra.mxu0 0.0
    %289 = vmatprep.subr.mxu0 0.0
    %290 = vmatpush1.msra.mxu0 0.0
    %291 = vmatprep.subr.mxu0 0.0
    %292 = vmatpush1.msra.mxu0 0.0
    %293 = vmatprep.subr.mxu0 0.0
    %294 = vmatpush1.msra.mxu0 0.0
    %295 = vmatprep.subr.mxu0 0.0
    %296 = vmatpush1.msra.mxu0 0.0
    %297 = vmatprep.subr.mxu0 0.0
    %298 = vmatpush1.msra.mxu0 0.0
    %299 = vmatprep.subr.mxu0 0.0
    %300 = vmatpush1.msra.mxu0 0.0
    %301 = vmatprep.subr.mxu0 0.0
    %302 = vmatpush1.msra.mxu0 0.0
    %303 = vmatprep.subr.mxu0 0.0
    %304 = vmatpush1.msra.mxu0 0.0
    %305 = vmatprep.subr.mxu0 0.0
    %306 = vmatpush1.msra.mxu0 0.0
    %307 = vmatprep.subr.mxu0 0.0
    %308 = vmatpush1.msra.mxu0 0.0
    %309 = vmatprep.subr.mxu0 0.0
    %310 = vmatpush1.msra.mxu0 0.0
    %311 = vmatprep.subr.mxu0 0.0
    %312 = vmatpush1.msra.mxu0 0.0
    %313 = vmatprep.subr.mxu0 0.0
    %314 = vmatpush1.msra.mxu0 0.0
    %315 = vmatprep.mubr.f32.mxu0 0.0
    %316 = vmatmul.mubr.f32.gmra.mrb[0].mxu0 %v246
    %v317 = vpop.f32.mrb[0].mxu0
    %v318 = vadd.f32 %v243, %v317
    %v319 = vpop.f32.mrb[0].mxu0
    %320 = vmatprep.mubr.f32.mxu0 0.0
    %321 = vmatmul.mubr.f32.gmra.mrb[0].mxu0 %v249
    %v322 = vpop.f32.mrb[0].mxu0
    %v323 = vadd.f32 %v243, %v322
    %v324 = vpop.f32.mrb[0].mxu0
    %325 = vdwg.mxu0
    %v326 = vld [vmem:[#allocation11] sm:$0xff]
    %v327 = vld [vmem:[#allocation11 + $0x8] sm:$0xff]
    %v328 = vld [vmem:[#allocation11 + $0x10] sm:$0xff]
    %v329 = vld [vmem:[#allocation11 + $0x18] sm:$0xff]
    %v330 = vld [vmem:[#allocation13] sm:$0x1]
    %v332 = vlaneseq
    %v333 = vshrl.u32 %v332, 7
    %v334 = vsub.s32 0, %v333
    %v335 = vrot.slane %v330, %v334
    %v338 = vsel %vm152, %v139, 0
    %v341 = vsel %vm152, %v140, 0
    %343 = vmatprep.subr.mxu0 0.0
    %344 = vmatpush1.msra.mxu0 %v326
    %345 = vmatprep.subr.mxu0 0.0
    %346 = vmatpush1.msra.mxu0 %v327
    %347 = vmatprep.subr.mxu0 0.0
    %348 = vmatpush1.msra.mxu0 %v328
    %349 = vmatprep.subr.mxu0 0.0
    %350 = vmatpush1.msra.mxu0 %v329
    %351 = vmatprep.subr.mxu0 0.0
    %352 = vmatpush1.msra.mxu0 0.0
    %353 = vmatprep.subr.mxu0 0.0
    %354 = vmatpush1.msra.mxu0 0.0
    %355 = vmatprep.subr.mxu0 0.0
    %356 = vmatpush1.msra.mxu0 0.0
    %357 = vmatprep.subr.mxu0 0.0
    %358 = vmatpush1.msra.mxu0 0.0
    %359 = vmatprep.subr.mxu0 0.0
    %360 = vmatpush1.msra.mxu0 0.0
    %361 = vmatprep.subr.mxu0 0.0
    %362 = vmatpush1.msra.mxu0 0.0
    %363 = vmatprep.subr.mxu0 0.0
    %364 = vmatpush1.msra.mxu0 0.0
    %365 = vmatprep.subr.mxu0 0.0
    %366 = vmatpush1.msra.mxu0 0.0
    %367 = vmatprep.subr.mxu0 0.0
    %368 = vmatpush1.msra.mxu0 0.0
    %369 = vmatprep.subr.mxu0 0.0
    %370 = vmatpush1.msra.mxu0 0.0
    %371 = vmatprep.subr.mxu0 0.0
    %372 = vmatpush1.msra.mxu0 0.0
    %373 = vmatprep.subr.mxu0 0.0
    %374 = vmatpush1.msra.mxu0 0.0
    %375 = vmatprep.subr.mxu0 0.0
    %376 = vmatpush1.msra.mxu0 0.0
    %377 = vmatprep.subr.mxu0 0.0
    %378 = vmatpush1.msra.mxu0 0.0
    %379 = vmatprep.subr.mxu0 0.0
    %380 = vmatpush1.msra.mxu0 0.0
    %381 = vmatprep.subr.mxu0 0.0
    %382 = vmatpush1.msra.mxu0 0.0
    %383 = vmatprep.subr.mxu0 0.0
    %384 = vmatpush1.msra.mxu0 0.0
    %385 = vmatprep.subr.mxu0 0.0
    %386 = vmatpush1.msra.mxu0 0.0
    %387 = vmatprep.subr.mxu0 0.0
    %388 = vmatpush1.msra.mxu0 0.0
    %389 = vmatprep.subr.mxu0 0.0
    %390 = vmatpush1.msra.mxu0 0.0
    %391 = vmatprep.subr.mxu0 0.0
    %392 = vmatpush1.msra.mxu0 0.0
    %393 = vmatprep.subr.mxu0 0.0
    %394 = vmatpush1.msra.mxu0 0.0
    %395 = vmatprep.subr.mxu0 0.0
    %396 = vmatpush1.msra.mxu0 0.0
    %397 = vmatprep.subr.mxu0 0.0
    %398 = vmatpush1.msra.mxu0 0.0
    %399 = vmatprep.subr.mxu0 0.0
    %400 = vmatpush1.msra.mxu0 0.0
    %401 = vmatprep.subr.mxu0 0.0
    %402 = vmatpush1.msra.mxu0 0.0
    %403 = vmatprep.subr.mxu0 0.0
    %404 = vmatpush1.msra.mxu0 0.0
    %405 = vmatprep.subr.mxu0 0.0
    %406 = vmatpush1.msra.mxu0 0.0
    %407 = vmatprep.mubr.f32.mxu0 0.0
    %408 = vmatmul.mubr.f32.gmra.mrb[0].mxu0 %v338
    %v409 = vpop.f32.mrb[0].mxu0
    %v410 = vadd.f32 %v335, %v409
    %v411 = vpop.f32.mrb[0].mxu0
    %412 = vmatprep.mubr.f32.mxu0 0.0
    %413 = vmatmul.mubr.f32.gmra.mrb[0].mxu0 %v341
    %v414 = vpop.f32.mrb[0].mxu0
    %v415 = vadd.f32 %v335, %v414
    %v416 = vpop.f32.mrb[0].mxu0
    %417 = vdwg.mxu0
    %vm418 = vcmask 64512
    %v420 = vsel %vm418, %v226, 0
    %v423 = vsel %vm418, %v318, 0
    %425 = vmatprep.subr.mxu0 0.0
    %426 = vmatpush1.xpose.msra.mxu0 %v423
    %427 = vmatprep.subr.mxu0 0.0
    %428 = vmatpush1.xpose.msra.mxu0 0.0
    %429 = vmatprep.subr.mxu0 0.0
    %430 = vmatpush1.xpose.msra.mxu0 0.0
    %431 = vmatprep.subr.mxu0 0.0
    %432 = vmatpush1.xpose.msra.mxu0 0.0
    %433 = vmatprep.subr.mxu0 0.0
    %434 = vmatpush1.xpose.msra.mxu0 0.0
    %435 = vmatprep.subr.mxu0 0.0
    %436 = vmatpush1.xpose.msra.mxu0 0.0
    %437 = vmatprep.subr.mxu0 0.0
    %438 = vmatpush1.xpose.msra.mxu0 0.0
    %439 = vmatprep.subr.mxu0 0.0
    %440 = vmatpush1.xpose.msra.mxu0 0.0
    %441 = vmatprep.subr.mxu0 0.0
    %442 = vmatpush1.xpose.msra.mxu0 0.0
    %443 = vmatprep.subr.mxu0 0.0
    %444 = vmatpush1.xpose.msra.mxu0 0.0
    %445 = vmatprep.subr.mxu0 0.0
    %446 = vmatpush1.xpose.msra.mxu0 0.0
    %447 = vmatprep.subr.mxu0 0.0
    %448 = vmatpush1.xpose.msra.mxu0 0.0
    %449 = vmatprep.subr.mxu0 0.0
    %450 = vmatpush1.xpose.msra.mxu0 0.0
    %451 = vmatprep.subr.mxu0 0.0
    %452 = vmatpush1.xpose.msra.mxu0 0.0
    %453 = vmatprep.subr.mxu0 0.0
    %454 = vmatpush1.xpose.msra.mxu0 0.0
    %455 = vmatprep.subr.mxu0 0.0
    %456 = vmatpush1.xpose.msra.mxu0 0.0
    %457 = vmatprep.subr.mxu0 0.0
    %458 = vmatpush1.xpose.msra.mxu0 0.0
    %459 = vmatprep.subr.mxu0 0.0
    %460 = vmatpush1.xpose.msra.mxu0 0.0
    %461 = vmatprep.subr.mxu0 0.0
    %462 = vmatpush1.xpose.msra.mxu0 0.0
    %463 = vmatprep.subr.mxu0 0.0
    %464 = vmatpush1.xpose.msra.mxu0 0.0
    %465 = vmatprep.subr.mxu0 0.0
    %466 = vmatpush1.xpose.msra.mxu0 0.0
    %467 = vmatprep.subr.mxu0 0.0
    %468 = vmatpush1.xpose.msra.mxu0 0.0
    %469 = vmatprep.subr.mxu0 0.0
    %470 = vmatpush1.xpose.msra.mxu0 0.0
    %471 = vmatprep.subr.mxu0 0.0
    %472 = vmatpush1.xpose.msra.mxu0 0.0
    %473 = vmatprep.subr.mxu0 0.0
    %474 = vmatpush1.xpose.msra.mxu0 0.0
    %475 = vmatprep.subr.mxu0 0.0
    %476 = vmatpush1.xpose.msra.mxu0 0.0
    %477 = vmatprep.subr.mxu0 0.0
    %478 = vmatpush1.xpose.msra.mxu0 0.0
    %479 = vmatprep.subr.mxu0 0.0
    %480 = vmatpush1.xpose.msra.mxu0 0.0
    %481 = vmatprep.subr.mxu0 0.0
    %482 = vmatpush1.xpose.msra.mxu0 0.0
    %483 = vmatprep.subr.mxu0 0.0
    %484 = vmatpush1.xpose.msra.mxu0 0.0
    %485 = vmatprep.subr.mxu0 0.0
    %486 = vmatpush1.xpose.msra.mxu0 0.0
    %487 = vmatprep.subr.mxu0 0.0
    %488 = vmatpush1.xpose.msra.mxu0 0.0
    %489 = vmatprep.mubr.f32.mxu0 0.0
    %490 = vmatmul.mubr.f32.gmra.mrb[0].mxu0 %v420
    %v491 = vpop.f32.mrb[0].mxu0
    %v492 = vadd.f32 0.0, %v491
    %v493 = vpop.f32.mrb[0].mxu0
    %494 = vdwg.mxu0
    %v496 = vsel %vm418, %v231, 0
    %v499 = vsel %vm418, %v323, 0
    %501 = vmatprep.subr.mxu0 0.0
    %502 = vmatpush1.xpose.msra.mxu0 %v499
    %503 = vmatprep.subr.mxu0 0.0
    %504 = vmatpush1.xpose.msra.mxu0 0.0
    %505 = vmatprep.subr.mxu0 0.0
    %506 = vmatpush1.xpose.msra.mxu0 0.0
    %507 = vmatprep.subr.mxu0 0.0
    %508 = vmatpush1.xpose.msra.mxu0 0.0
    %509 = vmatprep.subr.mxu0 0.0
    %510 = vmatpush1.xpose.msra.mxu0 0.0
    %511 = vmatprep.subr.mxu0 0.0
    %512 = vmatpush1.xpose.msra.mxu0 0.0
    %513 = vmatprep.subr.mxu0 0.0
    %514 = vmatpush1.xpose.msra.mxu0 0.0
    %515 = vmatprep.subr.mxu0 0.0
    %516 = vmatpush1.xpose.msra.mxu0 0.0
    %517 = vmatprep.subr.mxu0 0.0
    %518 = vmatpush1.xpose.msra.mxu0 0.0
    %519 = vmatprep.subr.mxu0 0.0
    %520 = vmatpush1.xpose.msra.mxu0 0.0
    %521 = vmatprep.subr.mxu0 0.0
    %522 = vmatpush1.xpose.msra.mxu0 0.0
    %523 = vmatprep.subr.mxu0 0.0
    %524 = vmatpush1.xpose.msra.mxu0 0.0
    %525 = vmatprep.subr.mxu0 0.0
    %526 = vmatpush1.xpose.msra.mxu0 0.0
    %527 = vmatprep.subr.mxu0 0.0
    %528 = vmatpush1.xpose.msra.mxu0 0.0
    %529 = vmatprep.subr.mxu0 0.0
    %530 = vmatpush1.xpose.msra.mxu0 0.0
    %531 = vmatprep.subr.mxu0 0.0
    %532 = vmatpush1.xpose.msra.mxu0 0.0
    %533 = vmatprep.subr.mxu0 0.0
    %534 = vmatpush1.xpose.msra.mxu0 0.0
    %535 = vmatprep.subr.mxu0 0.0
    %536 = vmatpush1.xpose.msra.mxu0 0.0
    %537 = vmatprep.subr.mxu0 0.0
    %538 = vmatpush1.xpose.msra.mxu0 0.0
    %539 = vmatprep.subr.mxu0 0.0
    %540 = vmatpush1.xpose.msra.mxu0 0.0
    %541 = vmatprep.subr.mxu0 0.0
    %542 = vmatpush1.xpose.msra.mxu0 0.0
    %543 = vmatprep.subr.mxu0 0.0
    %544 = vmatpush1.xpose.msra.mxu0 0.0
    %545 = vmatprep.subr.mxu0 0.0
    %546 = vmatpush1.xpose.msra.mxu0 0.0
    %547 = vmatprep.subr.mxu0 0.0
    %548 = vmatpush1.xpose.msra.mxu0 0.0
    %549 = vmatprep.subr.mxu0 0.0
    %550 = vmatpush1.xpose.msra.mxu0 0.0
    %551 = vmatprep.subr.mxu0 0.0
    %552 = vmatpush1.xpose.msra.mxu0 0.0
    %553 = vmatprep.subr.mxu0 0.0
    %554 = vmatpush1.xpose.msra.mxu0 0.0
    %555 = vmatprep.subr.mxu0 0.0
    %556 = vmatpush1.xpose.msra.mxu0 0.0
    %557 = vmatprep.subr.mxu0 0.0
    %558 = vmatpush1.xpose.msra.mxu0 0.0
    %559 = vmatprep.subr.mxu0 0.0
    %560 = vmatpush1.xpose.msra.mxu0 0.0
    %561 = vmatprep.subr.mxu0 0.0
    %562 = vmatpush1.xpose.msra.mxu0 0.0
    %563 = vmatprep.subr.mxu0 0.0
    %564 = vmatpush1.xpose.msra.mxu0 0.0
    %565 = vmatprep.mubr.f32.mxu0 0.0
    %566 = vmatmul.mubr.f32.gmra.mrb[0].mxu0 %v496
    %v567 = vpop.f32.mrb[0].mxu0
    %v568 = vadd.f32 0.0, %v567
    %v569 = vpop.f32.mrb[0].mxu0
    %570 = vdwg.mxu0
    %v571 = vsel %vm418, %v492, -inf
    %572 = vmax.xlane.f32.xlu0 %v571
    %v573 = vpop.xlane.xlu0 %572
    %v574 = vsel %vm418, %v568, -inf
    %575 = vmax.xlane.f32.xlu0 %v574
    %v576 = vpop.xlane.xlu0 %575
    %v577 = vsub.f32 %v492, %v573
    %v578 = vsub.f32 %v568, %v576
    %v579 = vmul.f32 %v577, 1.442695
    %v580 = vpow.pop %v579
    %v581 = vmul.f32 %v578, 1.442695
    %v582 = vpow.pop %v581
    %v583 = vsel %vm418, %v580, 0.0
    %584 = vadd.xlane.f32.xlu0 %v583
    %v585 = vpop.xlane.xlu0 %584
    %v586 = vsel %vm418, %v582, 0.0
    %587 = vadd.xlane.f32.xlu0 %v586
    %v588 = vpop.xlane.xlu0 %587
    %v589 = vrcp.pop %v585
    %v590 = vrcp.pop %v588
    %v591 = vmul.f32 %v580, %v589
    %v592 = vmul.f32 %v582, %v590
    %593 = vst.msk [vmem:[#allocation15] sm:$0xff] %vm418, %v591
    %594 = vst.msk [vmem:[#allocation15 + $0x20] sm:$0xff] %vm418, %v592
    %v596 = vsel %vm418, %v591, 0
    %598 = vmatprep.subr.mxu0 0.0
    %599 = vmatpush1.msra.mxu0 %v410
    %600 = vmatprep.subr.mxu0 0.0
    %601 = vmatpush1.msra.mxu0 0.0
    %602 = vmatprep.subr.mxu0 0.0
    %603 = vmatpush1.msra.mxu0 0.0
    %604 = vmatprep.subr.mxu0 0.0
    %605 = vmatpush1.msra.mxu0 0.0
    %606 = vmatprep.subr.mxu0 0.0
    %607 = vmatpush1.msra.mxu0 0.0
    %608 = vmatprep.subr.mxu0 0.0
    %609 = vmatpush1.msra.mxu0 0.0
    %610 = vmatprep.subr.mxu0 0.0
    %611 = vmatpush1.msra.mxu0 0.0
    %612 = vmatprep.subr.mxu0 0.0
    %613 = vmatpush1.msra.mxu0 0.0
    %614 = vmatprep.subr.mxu0 0.0
    %615 = vmatpush1.msra.mxu0 0.0
    %616 = vmatprep.subr.mxu0 0.0
    %617 = vmatpush1.msra.mxu0 0.0
    %618 = vmatprep.subr.mxu0 0.0
    %619 = vmatpush1.msra.mxu0 0.0
    %620 = vmatprep.subr.mxu0 0.0
    %621 = vmatpush1.msra.mxu0 0.0
    %622 = vmatprep.subr.mxu0 0.0
    %623 = vmatpush1.msra.mxu0 0.0
    %624 = vmatprep.subr.mxu0 0.0
    %625 = vmatpush1.msra.mxu0 0.0
    %626 = vmatprep.subr.mxu0 0.0
    %627 = vmatpush1.msra.mxu0 0.0
    %628 = vmatprep.subr.mxu0 0.0
    %629 = vmatpush1.msra.mxu0 0.0
    %630 = vmatprep.subr.mxu0 0.0
    %631 = vmatpush1.msra.mxu0 0.0
    %632 = vmatprep.subr.mxu0 0.0
    %633 = vmatpush1.msra.mxu0 0.0
    %634 = vmatprep.subr.mxu0 0.0
    %635 = vmatpush1.msra.mxu0 0.0
    %636 = vmatprep.subr.mxu0 0.0
    %637 = vmatpush1.msra.mxu0 0.0
    %638 = vmatprep.subr.mxu0 0.0
    %639 = vmatpush1.msra.mxu0 0.0
    %640 = vmatprep.subr.mxu0 0.0
    %641 = vmatpush1.msra.mxu0 0.0
    %642 = vmatprep.subr.mxu0 0.0
    %643 = vmatpush1.msra.mxu0 0.0
    %644 = vmatprep.subr.mxu0 0.0
    %645 = vmatpush1.msra.mxu0 0.0
    %646 = vmatprep.subr.mxu0 0.0
    %647 = vmatpush1.msra.mxu0 0.0
    %648 = vmatprep.subr.mxu0 0.0
    %649 = vmatpush1.msra.mxu0 0.0
    %650 = vmatprep.subr.mxu0 0.0
    %651 = vmatpush1.msra.mxu0 0.0
    %652 = vmatprep.subr.mxu0 0.0
    %653 = vmatpush1.msra.mxu0 0.0
    %654 = vmatprep.subr.mxu0 0.0
    %655 = vmatpush1.msra.mxu0 0.0
    %656 = vmatprep.subr.mxu0 0.0
    %657 = vmatpush1.msra.mxu0 0.0
    %658 = vmatprep.subr.mxu0 0.0
    %659 = vmatpush1.msra.mxu0 0.0
    %660 = vmatprep.subr.mxu0 0.0
    %661 = vmatpush1.msra.mxu0 0.0
    %662 = vmatprep.mubr.f32.mxu0 0.0
    %663 = vmatmul.mubr.f32.gmra.mrb[0].mxu0 %v596
    %v664 = vpop.f32.mrb[0].mxu0
    %v665 = vadd.f32 0.0, %v664
    %v666 = vpop.f32.mrb[0].mxu0
    %667 = vdwg.mxu0
    %v669 = vsel %vm418, %v592, 0
    %671 = vmatprep.subr.mxu0 0.0
    %672 = vmatpush1.msra.mxu0 %v415
    %673 = vmatprep.subr.mxu0 0.0
    %674 = vmatpush1.msra.mxu0 0.0
    %675 = vmatprep.subr.mxu0 0.0
    %676 = vmatpush1.msra.mxu0 0.0
    %677 = vmatprep.subr.mxu0 0.0
    %678 = vmatpush1.msra.mxu0 0.0
    %679 = vmatprep.subr.mxu0 0.0
    %680 = vmatpush1.msra.mxu0 0.0
    %681 = vmatprep.subr.mxu0 0.0
    %682 = vmatpush1.msra.mxu0 0.0
    %683 = vmatprep.subr.mxu0 0.0
    %684 = vmatpush1.msra.mxu0 0.0
    %685 = vmatprep.subr.mxu0 0.0
    %686 = vmatpush1.msra.mxu0 0.0
    %687 = vmatprep.subr.mxu0 0.0
    %688 = vmatpush1.msra.mxu0 0.0
    %689 = vmatprep.subr.mxu0 0.0
    %690 = vmatpush1.msra.mxu0 0.0
    %691 = vmatprep.subr.mxu0 0.0
    %692 = vmatpush1.msra.mxu0 0.0
    %693 = vmatprep.subr.mxu0 0.0
    %694 = vmatpush1.msra.mxu0 0.0
    %695 = vmatprep.subr.mxu0 0.0
    %696 = vmatpush1.msra.mxu0 0.0
    %697 = vmatprep.subr.mxu0 0.0
    %698 = vmatpush1.msra.mxu0 0.0
    %699 = vmatprep.subr.mxu0 0.0
    %700 = vmatpush1.msra.mxu0 0.0
    %701 = vmatprep.subr.mxu0 0.0
    %702 = vmatpush1.msra.mxu0 0.0
    %703 = vmatprep.subr.mxu0 0.0
    %704 = vmatpush1.msra.mxu0 0.0
    %705 = vmatprep.subr.mxu0 0.0
    %706 = vmatpush1.msra.mxu0 0.0
    %707 = vmatprep.subr.mxu0 0.0
    %708 = vmatpush1.msra.mxu0 0.0
    %709 = vmatprep.subr.mxu0 0.0
    %710 = vmatpush1.msra.mxu0 0.0
    %711 = vmatprep.subr.mxu0 0.0
    %712 = vmatpush1.msra.mxu0 0.0
    %713 = vmatprep.subr.mxu0 0.0
    %714 = vmatpush1.msra.mxu0 0.0
    %715 = vmatprep.subr.mxu0 0.0
    %716 = vmatpush1.msra.mxu0 0.0
    %717 = vmatprep.subr.mxu0 0.0
    %718 = vmatpush1.msra.mxu0 0.0
    %719 = vmatprep.subr.mxu0 0.0
    %720 = vmatpush1.msra.mxu0 0.0
    %721 = vmatprep.subr.mxu0 0.0
    %722 = vmatpush1.msra.mxu0 0.0
    %723 = vmatprep.subr.mxu0 0.0
    %724 = vmatpush1.msra.mxu0 0.0
    %725 = vmatprep.subr.mxu0 0.0
    %726 = vmatpush1.msra.mxu0 0.0
    %727 = vmatprep.subr.mxu0 0.0
    %728 = vmatpush1.msra.mxu0 0.0
    %729 = vmatprep.subr.mxu0 0.0
    %730 = vmatpush1.msra.mxu0 0.0
    %731 = vmatprep.subr.mxu0 0.0
    %732 = vmatpush1.msra.mxu0 0.0
    %733 = vmatprep.subr.mxu0 0.0
    %734 = vmatpush1.msra.mxu0 0.0
    %735 = vmatprep.mubr.f32.mxu0 0.0
    %736 = vmatmul.mubr.f32.gmra.mrb[0].mxu0 %v669
    %v737 = vpop.f32.mrb[0].mxu0
    %v738 = vadd.f32 0.0, %v737
    %v739 = vpop.f32.mrb[0].mxu0
    %740 = vdwg.mxu0
    %v741 = vld [vmem:[%s9] sm:$0xff]
    %742 = vrot.lane.b32.xlu0 %v226, 120
    %v743 = vpop.permute.xlu0 %742
    %744 = vrot.lane.b32.xlu0 %v318, 120
    %v745 = vpop.permute.xlu0 %744
    %v746 = vsel %vm418, %v743, 0
    %v748 = vsel %vm418, %v745, 0
    %750 = vmatprep.subr.mxu0 0.0
    %751 = vmatpush1.xpose.msra.mxu0 %v748
    %752 = vmatprep.subr.mxu0 0.0
    %753 = vmatpush1.xpose.msra.mxu0 0.0
    %754 = vmatprep.subr.mxu0 0.0
    %755 = vmatpush1.xpose.msra.mxu0 0.0
    %756 = vmatprep.subr.mxu0 0.0
    %757 = vmatpush1.xpose.msra.mxu0 0.0
    %758 = vmatprep.subr.mxu0 0.0
    %759 = vmatpush1.xpose.msra.mxu0 0.0
    %760 = vmatprep.subr.mxu0 0.0
    %761 = vmatpush1.xpose.msra.mxu0 0.0
    %762 = vmatprep.subr.mxu0 0.0
    %763 = vmatpush1.xpose.msra.mxu0 0.0
    %764 = vmatprep.subr.mxu0 0.0
    %765 = vmatpush1.xpose.msra.mxu0 0.0
    %766 = vmatprep.subr.mxu0 0.0
    %767 = vmatpush1.xpose.msra.mxu0 0.0
    %768 = vmatprep.subr.mxu0 0.0
    %769 = vmatpush1.xpose.msra.mxu0 0.0
    %770 = vmatprep.subr.mxu0 0.0
    %771 = vmatpush1.xpose.msra.mxu0 0.0
    %772 = vmatprep.subr.mxu0 0.0
    %773 = vmatpush1.xpose.msra.mxu0 0.0
    %774 = vmatprep.subr.mxu0 0.0
    %775 = vmatpush1.xpose.msra.mxu0 0.0
    %776 = vmatprep.subr.mxu0 0.0
    %777 = vmatpush1.xpose.msra.mxu0 0.0
    %778 = vmatprep.subr.mxu0 0.0
    %779 = vmatpush1.xpose.msra.mxu0 0.0
    %780 = vmatprep.subr.mxu0 0.0
    %781 = vmatpush1.xpose.msra.mxu0 0.0
    %782 = vmatprep.subr.mxu0 0.0
    %783 = vmatpush1.xpose.msra.mxu0 0.0
    %784 = vmatprep.subr.mxu0 0.0
    %785 = vmatpush1.xpose.msra.mxu0 0.0
    %786 = vmatprep.subr.mxu0 0.0
    %787 = vmatpush1.xpose.msra.mxu0 0.0
    %788 = vmatprep.subr.mxu0 0.0
    %789 = vmatpush1.xpose.msra.mxu0 0.0
    %790 = vmatprep.subr.mxu0 0.0
    %791 = vmatpush1.xpose.msra.mxu0 0.0
    %792 = vmatprep.subr.mxu0 0.0
    %793 = vmatpush1.xpose.msra.mxu0 0.0
    %794 = vmatprep.subr.mxu0 0.0
    %795 = vmatpush1.xpose.msra.mxu0 0.0
    %796 = vmatprep.subr.mxu0 0.0
    %797 = vmatpush1.xpose.msra.mxu0 0.0
    %798 = vmatprep.subr.mxu0 0.0
    %799 = vmatpush1.xpose.msra.mxu0 0.0
    %800 = vmatprep.subr.mxu0 0.0
    %801 = vmatpush1.xpose.msra.mxu0 0.0
    %802 = vmatprep.subr.mxu0 0.0
    %803 = vmatpush1.xpose.msra.mxu0 0.0
    %804 = vmatprep.subr.mxu0 0.0
    %805 = vmatpush1.xpose.msra.mxu0 0.0
    %806 = vmatprep.subr.mxu0 0.0
    %807 = vmatpush1.xpose.msra.mxu0 0.0
    %808 = vmatprep.subr.mxu0 0.0
    %809 = vmatpush1.xpose.msra.mxu0 0.0
    %810 = vmatprep.subr.mxu0 0.0
    %811 = vmatpush1.xpose.msra.mxu0 0.0
    %812 = vmatprep.subr.mxu0 0.0
    %813 = vmatpush1.xpose.msra.mxu0 0.0
    %814 = vmatprep.mubr.f32.mxu0 0.0
    %815 = vmatmul.mubr.f32.gmra.mrb[0].mxu0 %v746
    %v816 = vpop.f32.mrb[0].mxu0
    %v817 = vadd.f32 0.0, %v816
    %v818 = vpop.f32.mrb[0].mxu0
    %819 = vdwg.mxu0
    %820 = vrot.lane.b32.xlu0 %v231, 120
    %v821 = vpop.permute.xlu0 %820
    %822 = vrot.lane.b32.xlu0 %v323, 120
    %v823 = vpop.permute.xlu0 %822
    %v824 = vsel %vm418, %v821, 0
    %v826 = vsel %vm418, %v823, 0
    %828 = vmatprep.subr.mxu0 0.0
    %829 = vmatpush1.xpose.msra.mxu0 %v826
    %830 = vmatprep.subr.mxu0 0.0
    %831 = vmatpush1.xpose.msra.mxu0 0.0
    %832 = vmatprep.subr.mxu0 0.0
    %833 = vmatpush1.xpose.msra.mxu0 0.0
    %834 = vmatprep.subr.mxu0 0.0
    %835 = vmatpush1.xpose.msra.mxu0 0.0
    %836 = vmatprep.subr.mxu0 0.0
    %837 = vmatpush1.xpose.msra.mxu0 0.0
    %838 = vmatprep.subr.mxu0 0.0
    %839 = vmatpush1.xpose.msra.mxu0 0.0
    %840 = vmatprep.subr.mxu0 0.0
    %841 = vmatpush1.xpose.msra.mxu0 0.0
    %842 = vmatprep.subr.mxu0 0.0
    %843 = vmatpush1.xpose.msra.mxu0 0.0
    %844 = vmatprep.subr.mxu0 0.0
    %845 = vmatpush1.xpose.msra.mxu0 0.0
    %846 = vmatprep.subr.mxu0 0.0
    %847 = vmatpush1.xpose.msra.mxu0 0.0
    %848 = vmatprep.subr.mxu0 0.0
    %849 = vmatpush1.xpose.msra.mxu0 0.0
    %850 = vmatprep.subr.mxu0 0.0
    %851 = vmatpush1.xpose.msra.mxu0 0.0
    %852 = vmatprep.subr.mxu0 0.0
    %853 = vmatpush1.xpose.msra.mxu0 0.0
    %854 = vmatprep.subr.mxu0 0.0
    %855 = vmatpush1.xpose.msra.mxu0 0.0
    %856 = vmatprep.subr.mxu0 0.0
    %857 = vmatpush1.xpose.msra.mxu0 0.0
    %858 = vmatprep.subr.mxu0 0.0
    %859 = vmatpush1.xpose.msra.mxu0 0.0
    %860 = vmatprep.subr.mxu0 0.0
    %861 = vmatpush1.xpose.msra.mxu0 0.0
    %862 = vmatprep.subr.mxu0 0.0
    %863 = vmatpush1.xpose.msra.mxu0 0.0
    %864 = vmatprep.subr.mxu0 0.0
    %865 = vmatpush1.xpose.msra.mxu0 0.0
    %866 = vmatprep.subr.mxu0 0.0
    %867 = vmatpush1.xpose.msra.mxu0 0.0
    %868 = vmatprep.subr.mxu0 0.0
    %869 = vmatpush1.xpose.msra.mxu0 0.0
    %870 = vmatprep.subr.mxu0 0.0
    %871 = vmatpush1.xpose.msra.mxu0 0.0
    %872 = vmatprep.subr.mxu0 0.0
    %873 = vmatpush1.xpose.msra.mxu0 0.0
    %874 = vmatprep.subr.mxu0 0.0
    %875 = vmatpush1.xpose.msra.mxu0 0.0
    %876 = vmatprep.subr.mxu0 0.0
    %877 = vmatpush1.xpose.msra.mxu0 0.0
    %878 = vmatprep.subr.mxu0 0.0
    %879 = vmatpush1.xpose.msra.mxu0 0.0
    %880 = vmatprep.subr.mxu0 0.0
    %881 = vmatpush1.xpose.msra.mxu0 0.0
    %882 = vmatprep.subr.mxu0 0.0
    %883 = vmatpush1.xpose.msra.mxu0 0.0
    %884 = vmatprep.subr.mxu0 0.0
    %885 = vmatpush1.xpose.msra.mxu0 0.0
    %886 = vmatprep.subr.mxu0 0.0
    %887 = vmatpush1.xpose.msra.mxu0 0.0
    %888 = vmatprep.subr.mxu0 0.0
    %889 = vmatpush1.xpose.msra.mxu0 0.0
    %890 = vmatprep.subr.mxu0 0.0
    %891 = vmatpush1.xpose.msra.mxu0 0.0
    %892 = vmatprep.mubr.f32.mxu0 0.0
    %893 = vmatmul.mubr.f32.gmra.mrb[0].mxu0 %v824
    %v894 = vpop.f32.mrb[0].mxu0
    %v895 = vadd.f32 0.0, %v894
    %v896 = vpop.f32.mrb[0].mxu0
    %897 = vdwg.mxu0
    %v898 = vsel %vm418, %v817, -inf
    %899 = vmax.xlane.f32.xlu0 %v898
    %v900 = vpop.xlane.xlu0 %899
    %v901 = vsel %vm418, %v895, -inf
    %902 = vmax.xlane.f32.xlu0 %v901
    %v903 = vpop.xlane.xlu0 %902
    %v904 = vsub.f32 %v817, %v900
    %v905 = vsub.f32 %v895, %v903
    %v906 = vmul.f32 %v904, 1.442695
    %v907 = vpow.pop %v906
    %v908 = vmul.f32 %v905, 1.442695
    %v909 = vpow.pop %v908
    %v910 = vsel %vm418, %v907, 0.0
    %911 = vadd.xlane.f32.xlu0 %v910
    %v912 = vpop.xlane.xlu0 %911
    %v913 = vsel %vm418, %v909, 0.0
    %914 = vadd.xlane.f32.xlu0 %v913
    %v915 = vpop.xlane.xlu0 %914
    %v916 = vrcp.pop %v912
    %v917 = vrcp.pop %v915
    %v918 = vmul.f32 %v907, %v916
    %v919 = vmul.f32 %v909, %v917
    %s920 = scalar_lea.vmem [#allocation15], 8
    %921 = vst.msk [vmem:[%s920] sm:$0xff] %vm418, %v918
    %922 = vst.msk [vmem:[%s920 + $0x20] sm:$0xff] %vm418, %v919
    %924 = vrot.lane.b32.xlu0 %v410, 120
    %v925 = vpop.permute.xlu0 %924
    %v928 = vsel %vm418, %v918, 0
    %930 = vmatprep.subr.mxu0 0.0
    %931 = vmatpush1.msra.mxu0 %v925
    %932 = vmatprep.subr.mxu0 0.0
    %933 = vmatpush1.msra.mxu0 0.0
    %934 = vmatprep.subr.mxu0 0.0
    %935 = vmatpush1.msra.mxu0 0.0
    %936 = vmatprep.subr.mxu0 0.0
    %937 = vmatpush1.msra.mxu0 0.0
    %938 = vmatprep.subr.mxu0 0.0
    %939 = vmatpush1.msra.mxu0 0.0
    %940 = vmatprep.subr.mxu0 0.0
    %941 = vmatpush1.msra.mxu0 0.0
    %942 = vmatprep.subr.mxu0 0.0
    %943 = vmatpush1.msra.mxu0 0.0
    %944 = vmatprep.subr.mxu0 0.0
    %945 = vmatpush1.msra.mxu0 0.0
    %946 = vmatprep.subr.mxu0 0.0
    %947 = vmatpush1.msra.mxu0 0.0
    %948 = vmatprep.subr.mxu0 0.0
    %949 = vmatpush1.msra.mxu0 0.0
    %950 = vmatprep.subr.mxu0 0.0
    %951 = vmatpush1.msra.mxu0 0.0
    %952 = vmatprep.subr.mxu0 0.0
    %953 = vmatpush1.msra.mxu0 0.0
    %954 = vmatprep.subr.mxu0 0.0
    %955 = vmatpush1.msra.mxu0 0.0
    %956 = vmatprep.subr.mxu0 0.0
    %957 = vmatpush1.msra.mxu0 0.0
    %958 = vmatprep.subr.mxu0 0.0
    %959 = vmatpush1.msra.mxu0 0.0
    %960 = vmatprep.subr.mxu0 0.0
    %961 = vmatpush1.msra.mxu0 0.0
    %962 = vmatprep.subr.mxu0 0.0
    %963 = vmatpush1.msra.mxu0 0.0
    %964 = vmatprep.subr.mxu0 0.0
    %965 = vmatpush1.msra.mxu0 0.0
    %966 = vmatprep.subr.mxu0 0.0
    %967 = vmatpush1.msra.mxu0 0.0
    %968 = vmatprep.subr.mxu0 0.0
    %969 = vmatpush1.msra.mxu0 0.0
    %970 = vmatprep.subr.mxu0 0.0
    %971 = vmatpush1.msra.mxu0 0.0
    %972 = vmatprep.subr.mxu0 0.0
    %973 = vmatpush1.msra.mxu0 0.0
    %974 = vmatprep.subr.mxu0 0.0
    %975 = vmatpush1.msra.mxu0 0.0
    %976 = vmatprep.subr.mxu0 0.0
    %977 = vmatpush1.msra.mxu0 0.0
    %978 = vmatprep.subr.mxu0 0.0
    %979 = vmatpush1.msra.mxu0 0.0
    %980 = vmatprep.subr.mxu0 0.0
    %981 = vmatpush1.msra.mxu0 0.0
    %982 = vmatprep.subr.mxu0 0.0
    %983 = vmatpush1.msra.mxu0 0.0
    %984 = vmatprep.subr.mxu0 0.0
    %985 = vmatpush1.msra.mxu0 0.0
    %986 = vmatprep.subr.mxu0 0.0
    %987 = vmatpush1.msra.mxu0 0.0
    %988 = vmatprep.subr.mxu0 0.0
    %989 = vmatpush1.msra.mxu0 0.0
    %990 = vmatprep.subr.mxu0 0.0
    %991 = vmatpush1.msra.mxu0 0.0
    %992 = vmatprep.subr.mxu0 0.0
    %993 = vmatpush1.msra.mxu0 0.0
    %994 = vmatprep.mubr.f32.mxu0 0.0
    %995 = vmatmul.mubr.f32.gmra.mrb[0].mxu0 %v928
    %v996 = vpop.f32.mrb[0].mxu0
    %v997 = vadd.f32 0.0, %v996
    %v998 = vpop.f32.mrb[0].mxu0
    %999 = vdwg.mxu0
    %1001 = vrot.lane.b32.xlu0 %v415, 120
    %v1002 = vpop.permute.xlu0 %1001
    %v1005 = vsel %vm418, %v919, 0
    %1007 = vmatprep.subr.mxu0 0.0
    %1008 = vmatpush1.msra.mxu0 %v1002
    %1009 = vmatprep.subr.mxu0 0.0
    %1010 = vmatpush1.msra.mxu0 0.0
    %1011 = vmatprep.subr.mxu0 0.0
    %1012 = vmatpush1.msra.mxu0 0.0
    %1013 = vmatprep.subr.mxu0 0.0
    %1014 = vmatpush1.msra.mxu0 0.0
    %1015 = vmatprep.subr.mxu0 0.0
    %1016 = vmatpush1.msra.mxu0 0.0
    %1017 = vmatprep.subr.mxu0 0.0
    %1018 = vmatpush1.msra.mxu0 0.0
    %1019 = vmatprep.subr.mxu0 0.0
    %1020 = vmatpush1.msra.mxu0 0.0
    %1021 = vmatprep.subr.mxu0 0.0
    %1022 = vmatpush1.msra.mxu0 0.0
    %1023 = vmatprep.subr.mxu0 0.0
    %1024 = vmatpush1.msra.mxu0 0.0
    %1025 = vmatprep.subr.mxu0 0.0
    %1026 = vmatpush1.msra.mxu0 0.0
    %1027 = vmatprep.subr.mxu0 0.0
    %1028 = vmatpush1.msra.mxu0 0.0
    %1029 = vmatprep.subr.mxu0 0.0
    %1030 = vmatpush1.msra.mxu0 0.0
    %1031 = vmatprep.subr.mxu0 0.0
    %1032 = vmatpush1.msra.mxu0 0.0
    %1033 = vmatprep.subr.mxu0 0.0
    %1034 = vmatpush1.msra.mxu0 0.0
    %1035 = vmatprep.subr.mxu0 0.0
    %1036 = vmatpush1.msra.mxu0 0.0
    %1037 = vmatprep.subr.mxu0 0.0
    %1038 = vmatpush1.msra.mxu0 0.0
    %1039 = vmatprep.subr.mxu0 0.0
    %1040 = vmatpush1.msra.mxu0 0.0
    %1041 = vmatprep.subr.mxu0 0.0
    %1042 = vmatpush1.msra.mxu0 0.0
    %1043 = vmatprep.subr.mxu0 0.0
    %1044 = vmatpush1.msra.mxu0 0.0
    %1045 = vmatprep.subr.mxu0 0.0
    %1046 = vmatpush1.msra.mxu0 0.0
    %1047 = vmatprep.subr.mxu0 0.0
    %1048 = vmatpush1.msra.mxu0 0.0
    %1049 = vmatprep.subr.mxu0 0.0
    %1050 = vmatpush1.msra.mxu0 0.0
    %1051 = vmatprep.subr.mxu0 0.0
    %1052 = vmatpush1.msra.mxu0 0.0
    %1053 = vmatprep.subr.mxu0 0.0
    %1054 = vmatpush1.msra.mxu0 0.0
    %1055 = vmatprep.subr.mxu0 0.0
    %1056 = vmatpush1.msra.mxu0 0.0
    %1057 = vmatprep.subr.mxu0 0.0
    %1058 = vmatpush1.msra.mxu0 0.0
    %1059 = vmatprep.subr.mxu0 0.0
    %1060 = vmatpush1.msra.mxu0 0.0
    %1061 = vmatprep.subr.mxu0 0.0
    %1062 = vmatpush1.msra.mxu0 0.0
    %1063 = vmatprep.subr.mxu0 0.0
    %1064 = vmatpush1.msra.mxu0 0.0
    %1065 = vmatprep.subr.mxu0 0.0
    %1066 = vmatpush1.msra.mxu0 0.0
    %1067 = vmatprep.subr.mxu0 0.0
    %1068 = vmatpush1.msra.mxu0 0.0
    %1069 = vmatprep.subr.mxu0 0.0
    %1070 = vmatpush1.msra.mxu0 0.0
    %1071 = vmatprep.mubr.f32.mxu0 0.0
    %1072 = vmatmul.mubr.f32.gmra.mrb[0].mxu0 %v1005
    %v1073 = vpop.f32.mrb[0].mxu0
    %v1074 = vadd.f32 0.0, %v1073
    %v1075 = vpop.f32.mrb[0].mxu0
    %1076 = vdwg.mxu0
    %v1077 = vld [vmem:[%s9 + $0x8] sm:$0xff]
    %v1079 = vsel %vm418, %v997, 0
    %v1082 = vsel %vm418, %v1074, 0
    %1084 = vmatprep.subr.mxu0 0.0
    %1085 = vmatpush1.msra.mxu0 %v1077
    %1086 = vmatprep.subr.mxu0 0.0
    %1087 = vmatpush1.msra.mxu0 0.0
    %1088 = vmatprep.subr.mxu0 0.0
    %1089 = vmatpush1.msra.mxu0 0.0
    %1090 = vmatprep.subr.mxu0 0.0
    %1091 = vmatpush1.msra.mxu0 0.0
    %1092 = vmatprep.subr.mxu0 0.0
    %1093 = vmatpush1.msra.mxu0 0.0
    %1094 = vmatprep.subr.mxu0 0.0
    %1095 = vmatpush1.msra.mxu0 0.0
    %1096 = vmatprep.subr.mxu0 0.0
    %1097 = vmatpush1.msra.mxu0 0.0
    %1098 = vmatprep.subr.mxu0 0.0
    %1099 = vmatpush1.msra.mxu0 0.0
    %1100 = vmatprep.subr.mxu0 0.0
    %1101 = vmatpush1.msra.mxu0 0.0
    %1102 = vmatprep.subr.mxu0 0.0
    %1103 = vmatpush1.msra.mxu0 0.0
    %1104 = vmatprep.subr.mxu0 0.0
    %1105 = vmatpush1.msra.mxu0 0.0
    %1106 = vmatprep.subr.mxu0 0.0
    %1107 = vmatpush1.msra.mxu0 0.0
    %1108 = vmatprep.subr.mxu0 0.0
    %1109 = vmatpush1.msra.mxu0 0.0
    %1110 = vmatprep.subr.mxu0 0.0
    %1111 = vmatpush1.msra.mxu0 0.0
    %1112 = vmatprep.subr.mxu0 0.0
    %1113 = vmatpush1.msra.mxu0 0.0
    %1114 = vmatprep.subr.mxu0 0.0
    %1115 = vmatpush1.msra.mxu0 0.0
    %1116 = vmatprep.subr.mxu0 0.0
    %1117 = vmatpush1.msra.mxu0 0.0
    %1118 = vmatprep.subr.mxu0 0.0
    %1119 = vmatpush1.msra.mxu0 0.0
    %1120 = vmatprep.subr.mxu0 0.0
    %1121 = vmatpush1.msra.mxu0 0.0
    %1122 = vmatprep.subr.mxu0 0.0
    %1123 = vmatpush1.msra.mxu0 0.0
    %1124 = vmatprep.subr.mxu0 0.0
    %1125 = vmatpush1.msra.mxu0 0.0
    %1126 = vmatprep.subr.mxu0 0.0
    %1127 = vmatpush1.msra.mxu0 0.0
    %1128 = vmatprep.subr.mxu0 0.0
    %1129 = vmatpush1.msra.mxu0 0.0
    %1130 = vmatprep.subr.mxu0 0.0
    %1131 = vmatpush1.msra.mxu0 0.0
    %1132 = vmatprep.subr.mxu0 0.0
    %1133 = vmatpush1.msra.mxu0 0.0
    %1134 = vmatprep.subr.mxu0 0.0
    %1135 = vmatpush1.msra.mxu0 0.0
    %1136 = vmatprep.subr.mxu0 0.0
    %1137 = vmatpush1.msra.mxu0 0.0
    %1138 = vmatprep.subr.mxu0 0.0
    %1139 = vmatpush1.msra.mxu0 0.0
    %1140 = vmatprep.subr.mxu0 0.0
    %1141 = vmatpush1.msra.mxu0 0.0
    %1142 = vmatprep.subr.mxu0 0.0
    %1143 = vmatpush1.msra.mxu0 0.0
    %1144 = vmatprep.subr.mxu0 0.0
    %1145 = vmatpush1.msra.mxu0 0.0
    %1146 = vmatprep.subr.mxu0 0.0
    %1147 = vmatpush1.msra.mxu0 0.0
    %1148 = vmatprep.mubr.f32.mxu0 0.0
    %1149 = vmatmul.mubr.f32.gmra.mrb[0].mxu0 %v1079
    %v1150 = vpop.f32.mrb[0].mxu0
    %v1151 = vadd.f32 0.0, %v1150
    %v1152 = vpop.f32.mrb[0].mxu0
    %1153 = vmatprep.mubr.f32.mxu0 0.0
    %1154 = vmatmul.mubr.f32.gmra.mrb[0].mxu0 %v1082
    %v1155 = vpop.f32.mrb[0].mxu0
    %v1156 = vadd.f32 0.0, %v1155
    %v1157 = vpop.f32.mrb[0].mxu0
    %1158 = vdwg.mxu0
    %v1160 = vsel %vm418, %v665, 0
    %v1163 = vsel %vm418, %v738, 0
    %1165 = vmatprep.subr.mxu0 0.0
    %1166 = vmatpush1.msra.mxu0 %v741
    %1167 = vmatprep.subr.mxu0 0.0
    %1168 = vmatpush1.msra.mxu0 0.0
    %1169 = vmatprep.subr.mxu0 0.0
    %1170 = vmatpush1.msra.mxu0 0.0
    %1171 = vmatprep.subr.mxu0 0.0
    %1172 = vmatpush1.msra.mxu0 0.0
    %1173 = vmatprep.subr.mxu0 0.0
    %1174 = vmatpush1.msra.mxu0 0.0
    %1175 = vmatprep.subr.mxu0 0.0
    %1176 = vmatpush1.msra.mxu0 0.0
    %1177 = vmatprep.subr.mxu0 0.0
    %1178 = vmatpush1.msra.mxu0 0.0
    %1179 = vmatprep.subr.mxu0 0.0
    %1180 = vmatpush1.msra.mxu0 0.0
    %1181 = vmatprep.subr.mxu0 0.0
    %1182 = vmatpush1.msra.mxu0 0.0
    %1183 = vmatprep.subr.mxu0 0.0
    %1184 = vmatpush1.msra.mxu0 0.0
    %1185 = vmatprep.subr.mxu0 0.0
    %1186 = vmatpush1.msra.mxu0 0.0
    %1187 = vmatprep.subr.mxu0 0.0
    %1188 = vmatpush1.msra.mxu0 0.0
    %1189 = vmatprep.subr.mxu0 0.0
    %1190 = vmatpush1.msra.mxu0 0.0
    %1191 = vmatprep.subr.mxu0 0.0
    %1192 = vmatpush1.msra.mxu0 0.0
    %1193 = vmatprep.subr.mxu0 0.0
    %1194 = vmatpush1.msra.mxu0 0.0
    %1195 = vmatprep.subr.mxu0 0.0
    %1196 = vmatpush1.msra.mxu0 0.0
    %1197 = vmatprep.subr.mxu0 0.0
    %1198 = vmatpush1.msra.mxu0 0.0
    %1199 = vmatprep.subr.mxu0 0.0
    %1200 = vmatpush1.msra.mxu0 0.0
    %1201 = vmatprep.subr.mxu0 0.0
    %1202 = vmatpush1.msra.mxu0 0.0
    %1203 = vmatprep.subr.mxu0 0.0
    %1204 = vmatpush1.msra.mxu0 0.0
    %1205 = vmatprep.subr.mxu0 0.0
    %1206 = vmatpush1.msra.mxu0 0.0
    %1207 = vmatprep.subr.mxu0 0.0
    %1208 = vmatpush1.msra.mxu0 0.0
    %1209 = vmatprep.subr.mxu0 0.0
    %1210 = vmatpush1.msra.mxu0 0.0
    %1211 = vmatprep.subr.mxu0 0.0
    %1212 = vmatpush1.msra.mxu0 0.0
    %1213 = vmatprep.subr.mxu0 0.0
    %1214 = vmatpush1.msra.mxu0 0.0
    %1215 = vmatprep.subr.mxu0 0.0
    %1216 = vmatpush1.msra.mxu0 0.0
    %1217 = vmatprep.subr.mxu0 0.0
    %1218 = vmatpush1.msra.mxu0 0.0
    %1219 = vmatprep.subr.mxu0 0.0
    %1220 = vmatpush1.msra.mxu0 0.0
    %1221 = vmatprep.subr.mxu0 0.0
    %1222 = vmatpush1.msra.mxu0 0.0
    %1223 = vmatprep.subr.mxu0 0.0
    %1224 = vmatpush1.msra.mxu0 0.0
    %1225 = vmatprep.subr.mxu0 0.0
    %1226 = vmatpush1.msra.mxu0 0.0
    %1227 = vmatprep.subr.mxu0 0.0
    %1228 = vmatpush1.msra.mxu0 0.0
    %1229 = vmatprep.mubr.f32.mxu0 0.0
    %1230 = vmatmul.mubr.f32.gmra.mrb[0].mxu0 %v1160
    %v1231 = vpop.f32.mrb[0].mxu0
    %v1232 = vadd.f32 %v1151, %v1231
    %v1233 = vpop.f32.mrb[0].mxu0
    %1234 = vmatprep.mubr.f32.mxu0 0.0
    %1235 = vmatmul.mubr.f32.gmra.mrb[0].mxu0 %v1163
    %v1236 = vpop.f32.mrb[0].mxu0
    %v1237 = vadd.f32 %v1156, %v1236
    %v1238 = vpop.f32.mrb[0].mxu0
    %1239 = vdwg.mxu0
    %1240 = vrot.lane.b32.xlu0 %v226, 112
    %v1241 = vpop.permute.xlu0 %1240
    %1242 = vrot.lane.b32.xlu0 %v318, 112
    %v1243 = vpop.permute.xlu0 %1242
    %v1244 = vsel %vm418, %v1241, 0
    %v1246 = vsel %vm418, %v1243, 0
    %1248 = vmatprep.subr.mxu0 0.0
    %1249 = vmatpush1.xpose.msra.mxu0 %v1246
    %1250 = vmatprep.subr.mxu0 0.0
    %1251 = vmatpush1.xpose.msra.mxu0 0.0
    %1252 = vmatprep.subr.mxu0 0.0
    %1253 = vmatpush1.xpose.msra.mxu0 0.0
    %1254 = vmatprep.subr.mxu0 0.0
    %1255 = vmatpush1.xpose.msra.mxu0 0.0
    %1256 = vmatprep.subr.mxu0 0.0
    %1257 = vmatpush1.xpose.msra.mxu0 0.0
    %1258 = vmatprep.subr.mxu0 0.0
    %1259 = vmatpush1.xpose.msra.mxu0 0.0
    %1260 = vmatprep.subr.mxu0 0.0
    %1261 = vmatpush1.xpose.msra.mxu0 0.0
    %1262 = vmatprep.subr.mxu0 0.0
    %1263 = vmatpush1.xpose.msra.mxu0 0.0
    %1264 = vmatprep.subr.mxu0 0.0
    %1265 = vmatpush1.xpose.msra.mxu0 0.0
    %1266 = vmatprep.subr.mxu0 0.0
    %1267 = vmatpush1.xpose.msra.mxu0 0.0
    %1268 = vmatprep.subr.mxu0 0.0
    %1269 = vmatpush1.xpose.msra.mxu0 0.0
    %1270 = vmatprep.subr.mxu0 0.0
    %1271 = vmatpush1.xpose.msra.mxu0 0.0
    %1272 = vmatprep.subr.mxu0 0.0
    %1273 = vmatpush1.xpose.msra.mxu0 0.0
    %1274 = vmatprep.subr.mxu0 0.0
    %1275 = vmatpush1.xpose.msra.mxu0 0.0
    %1276 = vmatprep.subr.mxu0 0.0
    %1277 = vmatpush1.xpose.msra.mxu0 0.0
    %1278 = vmatprep.subr.mxu0 0.0
    %1279 = vmatpush1.xpose.msra.mxu0 0.0
    %1280 = vmatprep.subr.mxu0 0.0
    %1281 = vmatpush1.xpose.msra.mxu0 0.0
    %1282 = vmatprep.subr.mxu0 0.0
    %1283 = vmatpush1.xpose.msra.mxu0 0.0
    %1284 = vmatprep.subr.mxu0 0.0
    %1285 = vmatpush1.xpose.msra.mxu0 0.0
    %1286 = vmatprep.subr.mxu0 0.0
    %1287 = vmatpush1.xpose.msra.mxu0 0.0
    %1288 = vmatprep.subr.mxu0 0.0
    %1289 = vmatpush1.xpose.msra.mxu0 0.0
    %1290 = vmatprep.subr.mxu0 0.0
    %1291 = vmatpush1.xpose.msra.mxu0 0.0
    %1292 = vmatprep.subr.mxu0 0.0
    %1293 = vmatpush1.xpose.msra.mxu0 0.0
    %1294 = vmatprep.subr.mxu0 0.0
    %1295 = vmatpush1.xpose.msra.mxu0 0.0
    %1296 = vmatprep.subr.mxu0 0.0
    %1297 = vmatpush1.xpose.msra.mxu0 0.0
    %1298 = vmatprep.subr.mxu0 0.0
    %1299 = vmatpush1.xpose.msra.mxu0 0.0
    %1300 = vmatprep.subr.mxu0 0.0
    %1301 = vmatpush1.xpose.msra.mxu0 0.0
    %1302 = vmatprep.subr.mxu0 0.0
    %1303 = vmatpush1.xpose.msra.mxu0 0.0
    %1304 = vmatprep.subr.mxu0 0.0
    %1305 = vmatpush1.xpose.msra.mxu0 0.0
    %1306 = vmatprep.subr.mxu0 0.0
    %1307 = vmatpush1.xpose.msra.mxu0 0.0
    %1308 = vmatprep.subr.mxu0 0.0
    %1309 = vmatpush1.xpose.msra.mxu0 0.0
    %1310 = vmatprep.subr.mxu0 0.0
    %1311 = vmatpush1.xpose.msra.mxu0 0.0
    %1312 = vmatprep.mubr.f32.mxu0 0.0
    %1313 = vmatmul.mubr.f32.gmra.mrb[0].mxu0 %v1244
    %v1314 = vpop.f32.mrb[0].mxu0
    %v1315 = vadd.f32 0.0, %v1314
    %v1316 = vpop.f32.mrb[0].mxu0
    %1317 = vdwg.mxu0
    %1318 = vrot.lane.b32.xlu0 %v231, 112
    %v1319 = vpop.permute.xlu0 %1318
    %1320 = vrot.lane.b32.xlu0 %v323, 112
    %v1321 = vpop.permute.xlu0 %1320
    %v1322 = vsel %vm418, %v1319, 0
    %v1324 = vsel %vm418, %v1321, 0
    %1326 = vmatprep.subr.mxu0 0.0
    %1327 = vmatpush1.xpose.msra.mxu0 %v1324
    %1328 = vmatprep.subr.mxu0 0.0
    %1329 = vmatpush1.xpose.msra.mxu0 0.0
    %1330 = vmatprep.subr.mxu0 0.0
    %1331 = vmatpush1.xpose.msra.mxu0 0.0
    %1332 = vmatprep.subr.mxu0 0.0
    %1333 = vmatpush1.xpose.msra.mxu0 0.0
    %1334 = vmatprep.subr.mxu0 0.0
    %1335 = vmatpush1.xpose.msra.mxu0 0.0
    %1336 = vmatprep.subr.mxu0 0.0
    %1337 = vmatpush1.xpose.msra.mxu0 0.0
    %1338 = vmatprep.subr.mxu0 0.0
    %1339 = vmatpush1.xpose.msra.mxu0 0.0
    %1340 = vmatprep.subr.mxu0 0.0
    %1341 = vmatpush1.xpose.msra.mxu0 0.0
    %1342 = vmatprep.subr.mxu0 0.0
    %1343 = vmatpush1.xpose.msra.mxu0 0.0
    %1344 = vmatprep.subr.mxu0 0.0
    %1345 = vmatpush1.xpose.msra.mxu0 0.0
    %1346 = vmatprep.subr.mxu0 0.0
    %1347 = vmatpush1.xpose.msra.mxu0 0.0
    %1348 = vmatprep.subr.mxu0 0.0
    %1349 = vmatpush1.xpose.msra.mxu0 0.0
    %1350 = vmatprep.subr.mxu0 0.0
    %1351 = vmatpush1.xpose.msra.mxu0 0.0
    %1352 = vmatprep.subr.mxu0 0.0
    %1353 = vmatpush1.xpose.msra.mxu0 0.0
    %1354 = vmatprep.subr.mxu0 0.0
    %1355 = vmatpush1.xpose.msra.mxu0 0.0
    %1356 = vmatprep.subr.mxu0 0.0
    %1357 = vmatpush1.xpose.msra.mxu0 0.0
    %1358 = vmatprep.subr.mxu0 0.0
    %1359 = vmatpush1.xpose.msra.mxu0 0.0
    %1360 = vmatprep.subr.mxu0 0.0
    %1361 = vmatpush1.xpose.msra.mxu0 0.0
    %1362 = vmatprep.subr.mxu0 0.0
    %1363 = vmatpush1.xpose.msra.mxu0 0.0
    %1364 = vmatprep.subr.mxu0 0.0
    %1365 = vmatpush1.xpose.msra.mxu0 0.0
    %1366 = vmatprep.subr.mxu0 0.0
    %1367 = vmatpush1.xpose.msra.mxu0 0.0
    %1368 = vmatprep.subr.mxu0 0.0
    %1369 = vmatpush1.xpose.msra.mxu0 0.0
    %1370 = vmatprep.subr.mxu0 0.0
    %1371 = vmatpush1.xpose.msra.mxu0 0.0
    %1372 = vmatprep.subr.mxu0 0.0
    %1373 = vmatpush1.xpose.msra.mxu0 0.0
    %1374 = vmatprep.subr.mxu0 0.0
    %1375 = vmatpush1.xpose.msra.mxu0 0.0
    %1376 = vmatprep.subr.mxu0 0.0
    %1377 = vmatpush1.xpose.msra.mxu0 0.0
    %1378 = vmatprep.subr.mxu0 0.0
    %1379 = vmatpush1.xpose.msra.mxu0 0.0
    %1380 = vmatprep.subr.mxu0 0.0
    %1381 = vmatpush1.xpose.msra.mxu0 0.0
    %1382 = vmatprep.subr.mxu0 0.0
    %1383 = vmatpush1.xpose.msra.mxu0 0.0
    %1384 = vmatprep.subr.mxu0 0.0
    %1385 = vmatpush1.xpose.msra.mxu0 0.0
    %1386 = vmatprep.subr.mxu0 0.0
    %1387 = vmatpush1.xpose.msra.mxu0 0.0
    %1388 = vmatprep.subr.mxu0 0.0
    %1389 = vmatpush1.xpose.msra.mxu0 0.0
    %1390 = vmatprep.mubr.f32.mxu0 0.0
    %1391 = vmatmul.mubr.f32.gmra.mrb[0].mxu0 %v1322
    %v1392 = vpop.f32.mrb[0].mxu0
    %v1393 = vadd.f32 0.0, %v1392
    %v1394 = vpop.f32.mrb[0].mxu0
    %1395 = vdwg.mxu0
    %v1396 = vsel %vm418, %v1315, -inf
    %1397 = vmax.xlane.f32.xlu0 %v1396
    %v1398 = vpop.xlane.xlu0 %1397
    %v1399 = vsel %vm418, %v1393, -inf
    %1400 = vmax.xlane.f32.xlu0 %v1399
    %v1401 = vpop.xlane.xlu0 %1400
    %v1402 = vsub.f32 %v1315, %v1398
    %v1403 = vsub.f32 %v1393, %v1401
    %v1404 = vmul.f32 %v1402, 1.442695
    %v1405 = vpow.pop %v1404
    %v1406 = vmul.f32 %v1403, 1.442695
    %v1407 = vpow.pop %v1406
    %v1408 = vsel %vm418, %v1405, 0.0
    %1409 = vadd.xlane.f32.xlu0 %v1408
    %v1410 = vpop.xlane.xlu0 %1409
    %v1411 = vsel %vm418, %v1407, 0.0
    %1412 = vadd.xlane.f32.xlu0 %v1411
    %v1413 = vpop.xlane.xlu0 %1412
    %v1414 = vrcp.pop %v1410
    %v1415 = vrcp.pop %v1413
    %v1416 = vmul.f32 %v1405, %v1414
    %v1417 = vmul.f32 %v1407, %v1415
    %s1418 = scalar_lea.vmem [#allocation15], 16
    %1419 = vst.msk [vmem:[%s1418] sm:$0xff] %vm418, %v1416
    %1420 = vst.msk [vmem:[%s1418 + $0x20] sm:$0xff] %vm418, %v1417
    %1421 = vrot.lane.b32.xlu0 %v410, 112
    %v1422 = vpop.permute.xlu0 %1421
    %v1425 = vsel %vm418, %v1416, 0
    %1427 = vmatprep.subr.mxu0 0.0
    %1428 = vmatpush1.msra.mxu0 %v1422
    %1429 = vmatprep.subr.mxu0 0.0
    %1430 = vmatpush1.msra.mxu0 0.0
    %1431 = vmatprep.subr.mxu0 0.0
    %1432 = vmatpush1.msra.mxu0 0.0
    %1433 = vmatprep.subr.mxu0 0.0
    %1434 = vmatpush1.msra.mxu0 0.0
    %1435 = vmatprep.subr.mxu0 0.0
    %1436 = vmatpush1.msra.mxu0 0.0
    %1437 = vmatprep.subr.mxu0 0.0
    %1438 = vmatpush1.msra.mxu0 0.0
    %1439 = vmatprep.subr.mxu0 0.0
    %1440 = vmatpush1.msra.mxu0 0.0
    %1441 = vmatprep.subr.mxu0 0.0
    %1442 = vmatpush1.msra.mxu0 0.0
    %1443 = vmatprep.subr.mxu0 0.0
    %1444 = vmatpush1.msra.mxu0 0.0
    %1445 = vmatprep.subr.mxu0 0.0
    %1446 = vmatpush1.msra.mxu0 0.0
    %1447 = vmatprep.subr.mxu0 0.0
    %1448 = vmatpush1.msra.mxu0 0.0
    %1449 = vmatprep.subr.mxu0 0.0
    %1450 = vmatpush1.msra.mxu0 0.0
    %1451 = vmatprep.subr.mxu0 0.0
    %1452 = vmatpush1.msra.mxu0 0.0
    %1453 = vmatprep.subr.mxu0 0.0
    %1454 = vmatpush1.msra.mxu0 0.0
    %1455 = vmatprep.subr.mxu0 0.0
    %1456 = vmatpush1.msra.mxu0 0.0
    %1457 = vmatprep.subr.mxu0 0.0
    %1458 = vmatpush1.msra.mxu0 0.0
    %1459 = vmatprep.subr.mxu0 0.0
    %1460 = vmatpush1.msra.mxu0 0.0
    %1461 = vmatprep.subr.mxu0 0.0
    %1462 = vmatpush1.msra.mxu0 0.0
    %1463 = vmatprep.subr.mxu0 0.0
    %1464 = vmatpush1.msra.mxu0 0.0
    %1465 = vmatprep.subr.mxu0 0.0
    %1466 = vmatpush1.msra.mxu0 0.0
    %1467 = vmatprep.subr.mxu0 0.0
    %1468 = vmatpush1.msra.mxu0 0.0
    %1469 = vmatprep.subr.mxu0 0.0
    %1470 = vmatpush1.msra.mxu0 0.0
    %1471 = vmatprep.subr.mxu0 0.0
    %1472 = vmatpush1.msra.mxu0 0.0
    %1473 = vmatprep.subr.mxu0 0.0
    %1474 = vmatpush1.msra.mxu0 0.0
    %1475 = vmatprep.subr.mxu0 0.0
    %1476 = vmatpush1.msra.mxu0 0.0
    %1477 = vmatprep.subr.mxu0 0.0
    %1478 = vmatpush1.msra.mxu0 0.0
    %1479 = vmatprep.subr.mxu0 0.0
    %1480 = vmatpush1.msra.mxu0 0.0
    %1481 = vmatprep.subr.mxu0 0.0
    %1482 = vmatpush1.msra.mxu0 0.0
    %1483 = vmatprep.subr.mxu0 0.0
    %1484 = vmatpush1.msra.mxu0 0.0
    %1485 = vmatprep.subr.mxu0 0.0
    %1486 = vmatpush1.msra.mxu0 0.0
    %1487 = vmatprep.subr.mxu0 0.0
    %1488 = vmatpush1.msra.mxu0 0.0
    %1489 = vmatprep.subr.mxu0 0.0
    %1490 = vmatpush1.msra.mxu0 0.0
    %1491 = vmatprep.mubr.f32.mxu0 0.0
    %1492 = vmatmul.mubr.f32.gmra.mrb[0].mxu0 %v1425
    %v1493 = vpop.f32.mrb[0].mxu0
    %v1494 = vadd.f32 0.0, %v1493
    %v1495 = vpop.f32.mrb[0].mxu0
    %1496 = vdwg.mxu0
    %1497 = vrot.lane.b32.xlu0 %v415, 112
    %v1498 = vpop.permute.xlu0 %1497
    %v1501 = vsel %vm418, %v1417, 0
    %1503 = vmatprep.subr.mxu0 0.0
    %1504 = vmatpush1.msra.mxu0 %v1498
    %1505 = vmatprep.subr.mxu0 0.0
    %1506 = vmatpush1.msra.mxu0 0.0
    %1507 = vmatprep.subr.mxu0 0.0
    %1508 = vmatpush1.msra.mxu0 0.0
    %1509 = vmatprep.subr.mxu0 0.0
    %1510 = vmatpush1.msra.mxu0 0.0
    %1511 = vmatprep.subr.mxu0 0.0
    %1512 = vmatpush1.msra.mxu0 0.0
    %1513 = vmatprep.subr.mxu0 0.0
    %1514 = vmatpush1.msra.mxu0 0.0
    %1515 = vmatprep.subr.mxu0 0.0
    %1516 = vmatpush1.msra.mxu0 0.0
    %1517 = vmatprep.subr.mxu0 0.0
    %1518 = vmatpush1.msra.mxu0 0.0
    %1519 = vmatprep.subr.mxu0 0.0
    %1520 = vmatpush1.msra.mxu0 0.0
    %1521 = vmatprep.subr.mxu0 0.0
    %1522 = vmatpush1.msra.mxu0 0.0
    %1523 = vmatprep.subr.mxu0 0.0
    %1524 = vmatpush1.msra.mxu0 0.0
    %1525 = vmatprep.subr.mxu0 0.0
    %1526 = vmatpush1.msra.mxu0 0.0
    %1527 = vmatprep.subr.mxu0 0.0
    %1528 = vmatpush1.msra.mxu0 0.0
    %1529 = vmatprep.subr.mxu0 0.0
    %1530 = vmatpush1.msra.mxu0 0.0
    %1531 = vmatprep.subr.mxu0 0.0
    %1532 = vmatpush1.msra.mxu0 0.0
    %1533 = vmatprep.subr.mxu0 0.0
    %1534 = vmatpush1.msra.mxu0 0.0
    %1535 = vmatprep.subr.mxu0 0.0
    %1536 = vmatpush1.msra.mxu0 0.0
    %1537 = vmatprep.subr.mxu0 0.0
    %1538 = vmatpush1.msra.mxu0 0.0
    %1539 = vmatprep.subr.mxu0 0.0
    %1540 = vmatpush1.msra.mxu0 0.0
    %1541 = vmatprep.subr.mxu0 0.0
    %1542 = vmatpush1.msra.mxu0 0.0
    %1543 = vmatprep.subr.mxu0 0.0
    %1544 = vmatpush1.msra.mxu0 0.0
    %1545 = vmatprep.subr.mxu0 0.0
    %1546 = vmatpush1.msra.mxu0 0.0
    %1547 = vmatprep.subr.mxu0 0.0
    %1548 = vmatpush1.msra.mxu0 0.0
    %1549 = vmatprep.subr.mxu0 0.0
    %1550 = vmatpush1.msra.mxu0 0.0
    %1551 = vmatprep.subr.mxu0 0.0
    %1552 = vmatpush1.msra.mxu0 0.0
    %1553 = vmatprep.subr.mxu0 0.0
    %1554 = vmatpush1.msra.mxu0 0.0
    %1555 = vmatprep.subr.mxu0 0.0
    %1556 = vmatpush1.msra.mxu0 0.0
    %1557 = vmatprep.subr.mxu0 0.0
    %1558 = vmatpush1.msra.mxu0 0.0
    %1559 = vmatprep.subr.mxu0 0.0
    %1560 = vmatpush1.msra.mxu0 0.0
    %1561 = vmatprep.subr.mxu0 0.0
    %1562 = vmatpush1.msra.mxu0 0.0
    %1563 = vmatprep.subr.mxu0 0.0
    %1564 = vmatpush1.msra.mxu0 0.0
    %1565 = vmatprep.subr.mxu0 0.0
    %1566 = vmatpush1.msra.mxu0 0.0
    %1567 = vmatprep.mubr.f32.mxu0 0.0
    %1568 = vmatmul.mubr.f32.gmra.mrb[0].mxu0 %v1501
    %v1569 = vpop.f32.mrb[0].mxu0
    %v1570 = vadd.f32 0.0, %v1569
    %v1571 = vpop.f32.mrb[0].mxu0
    %1572 = vdwg.mxu0
    %v1573 = vld [vmem:[%s9 + $0x10] sm:$0xff]
    %v1575 = vsel %vm418, %v1494, 0
    %v1578 = vsel %vm418, %v1570, 0
    %1580 = vmatprep.subr.mxu0 0.0
    %1581 = vmatpush1.msra.mxu0 %v1573
    %1582 = vmatprep.subr.mxu0 0.0
    %1583 = vmatpush1.msra.mxu0 0.0
    %1584 = vmatprep.subr.mxu0 0.0
    %1585 = vmatpush1.msra.mxu0 0.0
    %1586 = vmatprep.subr.mxu0 0.0
    %1587 = vmatpush1.msra.mxu0 0.0
    %1588 = vmatprep.subr.mxu0 0.0
    %1589 = vmatpush1.msra.mxu0 0.0
    %1590 = vmatprep.subr.mxu0 0.0
    %1591 = vmatpush1.msra.mxu0 0.0
    %1592 = vmatprep.subr.mxu0 0.0
    %1593 = vmatpush1.msra.mxu0 0.0
    %1594 = vmatprep.subr.mxu0 0.0
    %1595 = vmatpush1.msra.mxu0 0.0
    %1596 = vmatprep.subr.mxu0 0.0
    %1597 = vmatpush1.msra.mxu0 0.0
    %1598 = vmatprep.subr.mxu0 0.0
    %1599 = vmatpush1.msra.mxu0 0.0
    %1600 = vmatprep.subr.mxu0 0.0
    %1601 = vmatpush1.msra.mxu0 0.0
    %1602 = vmatprep.subr.mxu0 0.0
    %1603 = vmatpush1.msra.mxu0 0.0
    %1604 = vmatprep.subr.mxu0 0.0
    %1605 = vmatpush1.msra.mxu0 0.0
    %1606 = vmatprep.subr.mxu0 0.0
    %1607 = vmatpush1.msra.mxu0 0.0
    %1608 = vmatprep.subr.mxu0 0.0
    %1609 = vmatpush1.msra.mxu0 0.0
    %1610 = vmatprep.subr.mxu0 0.0
    %1611 = vmatpush1.msra.mxu0 0.0
    %1612 = vmatprep.subr.mxu0 0.0
    %1613 = vmatpush1.msra.mxu0 0.0
    %1614 = vmatprep.subr.mxu0 0.0
    %1615 = vmatpush1.msra.mxu0 0.0
    %1616 = vmatprep.subr.mxu0 0.0
    %1617 = vmatpush1.msra.mxu0 0.0
    %1618 = vmatprep.subr.mxu0 0.0
    %1619 = vmatpush1.msra.mxu0 0.0
    %1620 = vmatprep.subr.mxu0 0.0
    %1621 = vmatpush1.msra.mxu0 0.0
    %1622 = vmatprep.subr.mxu0 0.0
    %1623 = vmatpush1.msra.mxu0 0.0
    %1624 = vmatprep.subr.mxu0 0.0
    %1625 = vmatpush1.msra.mxu0 0.0
    %1626 = vmatprep.subr.mxu0 0.0
    %1627 = vmatpush1.msra.mxu0 0.0
    %1628 = vmatprep.subr.mxu0 0.0
    %1629 = vmatpush1.msra.mxu0 0.0
    %1630 = vmatprep.subr.mxu0 0.0
    %1631 = vmatpush1.msra.mxu0 0.0
    %1632 = vmatprep.subr.mxu0 0.0
    %1633 = vmatpush1.msra.mxu0 0.0
    %1634 = vmatprep.subr.mxu0 0.0
    %1635 = vmatpush1.msra.mxu0 0.0
    %1636 = vmatprep.subr.mxu0 0.0
    %1637 = vmatpush1.msra.mxu0 0.0
    %1638 = vmatprep.subr.mxu0 0.0
    %1639 = vmatpush1.msra.mxu0 0.0
    %1640 = vmatprep.subr.mxu0 0.0
    %1641 = vmatpush1.msra.mxu0 0.0
    %1642 = vmatprep.subr.mxu0 0.0
    %1643 = vmatpush1.msra.mxu0 0.0
    %1644 = vmatprep.mubr.f32.mxu0 0.0
    %1645 = vmatmul.mubr.f32.gmra.mrb[0].mxu0 %v1575
    %v1646 = vpop.f32.mrb[0].mxu0
    %v1647 = vadd.f32 0.0, %v1646
    %v1648 = vpop.f32.mrb[0].mxu0
    %1649 = vmatprep.mubr.f32.mxu0 0.0
    %1650 = vmatmul.mubr.f32.gmra.mrb[0].mxu0 %v1578
    %v1651 = vpop.f32.mrb[0].mxu0
    %v1652 = vadd.f32 0.0, %v1651
    %v1653 = vpop.f32.mrb[0].mxu0
    %1654 = vdwg.mxu0
    %v1655 = vadd.f32 %v1232, %v1647
    %v1656 = vadd.f32 %v1237, %v1652
    %1657 = vrot.lane.b32.xlu0 %v226, 104
    %v1658 = vpop.permute.xlu0 %1657
    %1659 = vrot.lane.b32.xlu0 %v318, 104
    %v1660 = vpop.permute.xlu0 %1659
    %v1661 = vsel %vm418, %v1658, 0
    %v1663 = vsel %vm418, %v1660, 0
    %1665 = vmatprep.subr.mxu0 0.0
    %1666 = vmatpush1.xpose.msra.mxu0 %v1663
    %1667 = vmatprep.subr.mxu0 0.0
    %1668 = vmatpush1.xpose.msra.mxu0 0.0
    %1669 = vmatprep.subr.mxu0 0.0
    %1670 = vmatpush1.xpose.msra.mxu0 0.0
    %1671 = vmatprep.subr.mxu0 0.0
    %1672 = vmatpush1.xpose.msra.mxu0 0.0
    %1673 = vmatprep.subr.mxu0 0.0
    %1674 = vmatpush1.xpose.msra.mxu0 0.0
    %1675 = vmatprep.subr.mxu0 0.0
    %1676 = vmatpush1.xpose.msra.mxu0 0.0
    %1677 = vmatprep.subr.mxu0 0.0
    %1678 = vmatpush1.xpose.msra.mxu0 0.0
    %1679 = vmatprep.subr.mxu0 0.0
    %1680 = vmatpush1.xpose.msra.mxu0 0.0
    %1681 = vmatprep.subr.mxu0 0.0
    %1682 = vmatpush1.xpose.msra.mxu0 0.0
    %1683 = vmatprep.subr.mxu0 0.0
    %1684 = vmatpush1.xpose.msra.mxu0 0.0
    %1685 = vmatprep.subr.mxu0 0.0
    %1686 = vmatpush1.xpose.msra.mxu0 0.0
    %1687 = vmatprep.subr.mxu0 0.0
    %1688 = vmatpush1.xpose.msra.mxu0 0.0
    %1689 = vmatprep.subr.mxu0 0.0
    %1690 = vmatpush1.xpose.msra.mxu0 0.0
    %1691 = vmatprep.subr.mxu0 0.0
    %1692 = vmatpush1.xpose.msra.mxu0 0.0
    %1693 = vmatprep.subr.mxu0 0.0
    %1694 = vmatpush1.xpose.msra.mxu0 0.0
    %1695 = vmatprep.subr.mxu0 0.0
    %1696 = vmatpush1.xpose.msra.mxu0 0.0
    %1697 = vmatprep.subr.mxu0 0.0
    %1698 = vmatpush1.xpose.msra.mxu0 0.0
    %1699 = vmatprep.subr.mxu0 0.0
    %1700 = vmatpush1.xpose.msra.mxu0 0.0
    %1701 = vmatprep.subr.mxu0 0.0
    %1702 = vmatpush1.xpose.msra.mxu0 0.0
    %1703 = vmatprep.subr.mxu0 0.0
    %1704 = vmatpush1.xpose.msra.mxu0 0.0
    %1705 = vmatprep.subr.mxu0 0.0
    %1706 = vmatpush1.xpose.msra.mxu0 0.0
    %1707 = vmatprep.subr.mxu0 0.0
    %1708 = vmatpush1.xpose.msra.mxu0 0.0
    %1709 = vmatprep.subr.mxu0 0.0
    %1710 = vmatpush1.xpose.msra.mxu0 0.0
    %1711 = vmatprep.subr.mxu0 0.0
    %1712 = vmatpush1.xpose.msra.mxu0 0.0
    %1713 = vmatprep.subr.mxu0 0.0
    %1714 = vmatpush1.xpose.msra.mxu0 0.0
    %1715 = vmatprep.subr.mxu0 0.0
    %1716 = vmatpush1.xpose.msra.mxu0 0.0
    %1717 = vmatprep.subr.mxu0 0.0
    %1718 = vmatpush1.xpose.msra.mxu0 0.0
    %1719 = vmatprep.subr.mxu0 0.0
    %1720 = vmatpush1.xpose.msra.mxu0 0.0
    %1721 = vmatprep.subr.mxu0 0.0
    %1722 = vmatpush1.xpose.msra.mxu0 0.0
    %1723 = vmatprep.subr.mxu0 0.0
    %1724 = vmatpush1.xpose.msra.mxu0 0.0
    %1725 = vmatprep.subr.mxu0 0.0
    %1726 = vmatpush1.xpose.msra.mxu0 0.0
    %1727 = vmatprep.subr.mxu0 0.0
    %1728 = vmatpush1.xpose.msra.mxu0 0.0
    %1729 = vmatprep.mubr.f32.mxu0 0.0
    %1730 = vmatmul.mubr.f32.gmra.mrb[0].mxu0 %v1661
    %v1731 = vpop.f32.mrb[0].mxu0
    %v1732 = vadd.f32 0.0, %v1731
    %v1733 = vpop.f32.mrb[0].mxu0
    %1734 = vdwg.mxu0
    %1735 = vrot.lane.b32.xlu0 %v231, 104
    %v1736 = vpop.permute.xlu0 %1735
    %1737 = vrot.lane.b32.xlu0 %v323, 104
    %v1738 = vpop.permute.xlu0 %1737
    %v1739 = vsel %vm418, %v1736, 0
    %v1741 = vsel %vm418, %v1738, 0
    %1743 = vmatprep.subr.mxu0 0.0
    %1744 = vmatpush1.xpose.msra.mxu0 %v1741
    %1745 = vmatprep.subr.mxu0 0.0
    %1746 = vmatpush1.xpose.msra.mxu0 0.0
    %1747 = vmatprep.subr.mxu0 0.0
    %1748 = vmatpush1.xpose.msra.mxu0 0.0
    %1749 = vmatprep.subr.mxu0 0.0
    %1750 = vmatpush1.xpose.msra.mxu0 0.0
    %1751 = vmatprep.subr.mxu0 0.0
    %1752 = vmatpush1.xpose.msra.mxu0 0.0
    %1753 = vmatprep.subr.mxu0 0.0
    %1754 = vmatpush1.xpose.msra.mxu0 0.0
    %1755 = vmatprep.subr.mxu0 0.0
    %1756 = vmatpush1.xpose.msra.mxu0 0.0
    %1757 = vmatprep.subr.mxu0 0.0
    %1758 = vmatpush1.xpose.msra.mxu0 0.0
    %1759 = vmatprep.subr.mxu0 0.0
    %1760 = vmatpush1.xpose.msra.mxu0 0.0
    %1761 = vmatprep.subr.mxu0 0.0
    %1762 = vmatpush1.xpose.msra.mxu0 0.0
    %1763 = vmatprep.subr.mxu0 0.0
    %1764 = vmatpush1.xpose.msra.mxu0 0.0
    %1765 = vmatprep.subr.mxu0 0.0
    %1766 = vmatpush1.xpose.msra.mxu0 0.0
    %1767 = vmatprep.subr.mxu0 0.0
    %1768 = vmatpush1.xpose.msra.mxu0 0.0
    %1769 = vmatprep.subr.mxu0 0.0
    %1770 = vmatpush1.xpose.msra.mxu0 0.0
    %1771 = vmatprep.subr.mxu0 0.0
    %1772 = vmatpush1.xpose.msra.mxu0 0.0
    %1773 = vmatprep.subr.mxu0 0.0
    %1774 = vmatpush1.xpose.msra.mxu0 0.0
    %1775 = vmatprep.subr.mxu0 0.0
    %1776 = vmatpush1.xpose.msra.mxu0 0.0
    %1777 = vmatprep.subr.mxu0 0.0
    %1778 = vmatpush1.xpose.msra.mxu0 0.0
    %1779 = vmatprep.subr.mxu0 0.0
    %1780 = vmatpush1.xpose.msra.mxu0 0.0
    %1781 = vmatprep.subr.mxu0 0.0
    %1782 = vmatpush1.xpose.msra.mxu0 0.0
    %1783 = vmatprep.subr.mxu0 0.0
    %1784 = vmatpush1.xpose.msra.mxu0 0.0
    %1785 = vmatprep.subr.mxu0 0.0
    %1786 = vmatpush1.xpose.msra.mxu0 0.0
    %1787 = vmatprep.subr.mxu0 0.0
    %1788 = vmatpush1.xpose.msra.mxu0 0.0
    %1789 = vmatprep.subr.mxu0 0.0
    %1790 = vmatpush1.xpose.msra.mxu0 0.0
    %1791 = vmatprep.subr.mxu0 0.0
    %1792 = vmatpush1.xpose.msra.mxu0 0.0
    %1793 = vmatprep.subr.mxu0 0.0
    %1794 = vmatpush1.xpose.msra.mxu0 0.0
    %1795 = vmatprep.subr.mxu0 0.0
    %1796 = vmatpush1.xpose.msra.mxu0 0.0
    %1797 = vmatprep.subr.mxu0 0.0
    %1798 = vmatpush1.xpose.msra.mxu0 0.0
    %1799 = vmatprep.subr.mxu0 0.0
    %1800 = vmatpush1.xpose.msra.mxu0 0.0
    %1801 = vmatprep.subr.mxu0 0.0
    %1802 = vmatpush1.xpose.msra.mxu0 0.0
    %1803 = vmatprep.subr.mxu0 0.0
    %1804 = vmatpush1.xpose.msra.mxu0 0.0
    %1805 = vmatprep.subr.mxu0 0.0
    %1806 = vmatpush1.xpose.msra.mxu0 0.0
    %1807 = vmatprep.mubr.f32.mxu0 0.0
    %1808 = vmatmul.mubr.f32.gmra.mrb[0].mxu0 %v1739
    %v1809 = vpop.f32.mrb[0].mxu0
    %v1810 = vadd.f32 0.0, %v1809
    %v1811 = vpop.f32.mrb[0].mxu0
    %1812 = vdwg.mxu0
    %v1813 = vsel %vm418, %v1732, -inf
    %1814 = vmax.xlane.f32.xlu0 %v1813
    %v1815 = vpop.xlane.xlu0 %1814
    %v1816 = vsel %vm418, %v1810, -inf
    %1817 = vmax.xlane.f32.xlu0 %v1816
    %v1818 = vpop.xlane.xlu0 %1817
    %v1819 = vsub.f32 %v1732, %v1815
    %v1820 = vsub.f32 %v1810, %v1818
    %v1821 = vmul.f32 %v1819, 1.442695
    %v1822 = vpow.pop %v1821
    %v1823 = vmul.f32 %v1820, 1.442695
    %v1824 = vpow.pop %v1823
    %v1825 = vsel %vm418, %v1822, 0.0
    %1826 = vadd.xlane.f32.xlu0 %v1825
    %v1827 = vpop.xlane.xlu0 %1826
    %v1828 = vsel %vm418, %v1824, 0.0
    %1829 = vadd.xlane.f32.xlu0 %v1828
    %v1830 = vpop.xlane.xlu0 %1829
    %v1831 = vrcp.pop %v1827
    %v1832 = vrcp.pop %v1830
    %v1833 = vmul.f32 %v1822, %v1831
    %v1834 = vmul.f32 %v1824, %v1832
    %s1835 = scalar_lea.vmem [#allocation15], 24
    %1836 = vst.msk [vmem:[%s1835] sm:$0xff] %vm418, %v1833
    %1837 = vst.msk [vmem:[%s1835 + $0x20] sm:$0xff] %vm418, %v1834
    %1838 = vrot.lane.b32.xlu0 %v410, 104
    %v1839 = vpop.permute.xlu0 %1838
    %v1842 = vsel %vm418, %v1833, 0
    %1844 = vmatprep.subr.mxu0 0.0
    %1845 = vmatpush1.msra.mxu0 %v1839
    %1846 = vmatprep.subr.mxu0 0.0
    %1847 = vmatpush1.msra.mxu0 0.0
    %1848 = vmatprep.subr.mxu0 0.0
    %1849 = vmatpush1.msra.mxu0 0.0
    %1850 = vmatprep.subr.mxu0 0.0
    %1851 = vmatpush1.msra.mxu0 0.0
    %1852 = vmatprep.subr.mxu0 0.0
    %1853 = vmatpush1.msra.mxu0 0.0
    %1854 = vmatprep.subr.mxu0 0.0
    %1855 = vmatpush1.msra.mxu0 0.0
    %1856 = vmatprep.subr.mxu0 0.0
    %1857 = vmatpush1.msra.mxu0 0.0
    %1858 = vmatprep.subr.mxu0 0.0
    %1859 = vmatpush1.msra.mxu0 0.0
    %1860 = vmatprep.subr.mxu0 0.0
    %1861 = vmatpush1.msra.mxu0 0.0
    %1862 = vmatprep.subr.mxu0 0.0
    %1863 = vmatpush1.msra.mxu0 0.0
    %1864 = vmatprep.subr.mxu0 0.0
    %1865 = vmatpush1.msra.mxu0 0.0
    %1866 = vmatprep.subr.mxu0 0.0
    %1867 = vmatpush1.msra.mxu0 0.0
    %1868 = vmatprep.subr.mxu0 0.0
    %1869 = vmatpush1.msra.mxu0 0.0
    %1870 = vmatprep.subr.mxu0 0.0
    %1871 = vmatpush1.msra.mxu0 0.0
    %1872 = vmatprep.subr.mxu0 0.0
    %1873 = vmatpush1.msra.mxu0 0.0
    %1874 = vmatprep.subr.mxu0 0.0
    %1875 = vmatpush1.msra.mxu0 0.0
    %1876 = vmatprep.subr.mxu0 0.0
    %1877 = vmatpush1.msra.mxu0 0.0
    %1878 = vmatprep.subr.mxu0 0.0
    %1879 = vmatpush1.msra.mxu0 0.0
    %1880 = vmatprep.subr.mxu0 0.0
    %1881 = vmatpush1.msra.mxu0 0.0
    %1882 = vmatprep.subr.mxu0 0.0
    %1883 = vmatpush1.msra.mxu0 0.0
    %1884 = vmatprep.subr.mxu0 0.0
    %1885 = vmatpush1.msra.mxu0 0.0
    %1886 = vmatprep.subr.mxu0 0.0
    %1887 = vmatpush1.msra.mxu0 0.0
    %1888 = vmatprep.subr.mxu0 0.0
    %1889 = vmatpush1.msra.mxu0 0.0
    %1890 = vmatprep.subr.mxu0 0.0
    %1891 = vmatpush1.msra.mxu0 0.0
    %1892 = vmatprep.subr.mxu0 0.0
    %1893 = vmatpush1.msra.mxu0 0.0
    %1894 = vmatprep.subr.mxu0 0.0
    %1895 = vmatpush1.msra.mxu0 0.0
    %1896 = vmatprep.subr.mxu0 0.0
    %1897 = vmatpush1.msra.mxu0 0.0
    %1898 = vmatprep.subr.mxu0 0.0
    %1899 = vmatpush1.msra.mxu0 0.0
    %1900 = vmatprep.subr.mxu0 0.0
    %1901 = vmatpush1.msra.mxu0 0.0
    %1902 = vmatprep.subr.mxu0 0.0
    %1903 = vmatpush1.msra.mxu0 0.0
    %1904 = vmatprep.subr.mxu0 0.0
    %1905 = vmatpush1.msra.mxu0 0.0
    %1906 = vmatprep.subr.mxu0 0.0
    %1907 = vmatpush1.msra.mxu0 0.0
    %1908 = vmatprep.mubr.f32.mxu0 0.0
    %1909 = vmatmul.mubr.f32.gmra.mrb[0].mxu0 %v1842
    %v1910 = vpop.f32.mrb[0].mxu0
    %v1911 = vadd.f32 0.0, %v1910
    %v1912 = vpop.f32.mrb[0].mxu0
    %1913 = vdwg.mxu0
    %1914 = vrot.lane.b32.xlu0 %v415, 104
    %v1915 = vpop.permute.xlu0 %1914
    %v1918 = vsel %vm418, %v1834, 0
    %1920 = vmatprep.subr.mxu0 0.0
    %1921 = vmatpush1.msra.mxu0 %v1915
    %1922 = vmatprep.subr.mxu0 0.0
    %1923 = vmatpush1.msra.mxu0 0.0
    %1924 = vmatprep.subr.mxu0 0.0
    %1925 = vmatpush1.msra.mxu0 0.0
    %1926 = vmatprep.subr.mxu0 0.0
    %1927 = vmatpush1.msra.mxu0 0.0
    %1928 = vmatprep.subr.mxu0 0.0
    %1929 = vmatpush1.msra.mxu0 0.0
    %1930 = vmatprep.subr.mxu0 0.0
    %1931 = vmatpush1.msra.mxu0 0.0
    %1932 = vmatprep.subr.mxu0 0.0
    %1933 = vmatpush1.msra.mxu0 0.0
    %1934 = vmatprep.subr.mxu0 0.0
    %1935 = vmatpush1.msra.mxu0 0.0
    %1936 = vmatprep.subr.mxu0 0.0
    %1937 = vmatpush1.msra.mxu0 0.0
    %1938 = vmatprep.subr.mxu0 0.0
    %1939 = vmatpush1.msra.mxu0 0.0
    %1940 = vmatprep.subr.mxu0 0.0
    %1941 = vmatpush1.msra.mxu0 0.0
    %1942 = vmatprep.subr.mxu0 0.0
    %1943 = vmatpush1.msra.mxu0 0.0
    %1944 = vmatprep.subr.mxu0 0.0
    %1945 = vmatpush1.msra.mxu0 0.0
    %1946 = vmatprep.subr.mxu0 0.0
    %1947 = vmatpush1.msra.mxu0 0.0
    %1948 = vmatprep.subr.mxu0 0.0
    %1949 = vmatpush1.msra.mxu0 0.0
    %1950 = vmatprep.subr.mxu0 0.0
    %1951 = vmatpush1.msra.mxu0 0.0
    %1952 = vmatprep.subr.mxu0 0.0
    %1953 = vmatpush1.msra.mxu0 0.0
    %1954 = vmatprep.subr.mxu0 0.0
    %1955 = vmatpush1.msra.mxu0 0.0
    %1956 = vmatprep.subr.mxu0 0.0
    %1957 = vmatpush1.msra.mxu0 0.0
    %1958 = vmatprep.subr.mxu0 0.0
    %1959 = vmatpush1.msra.mxu0 0.0
    %1960 = vmatprep.subr.mxu0 0.0
    %1961 = vmatpush1.msra.mxu0 0.0
    %1962 = vmatprep.subr.mxu0 0.0
    %1963 = vmatpush1.msra.mxu0 0.0
    %1964 = vmatprep.subr.mxu0 0.0
    %1965 = vmatpush1.msra.mxu0 0.0
    %1966 = vmatprep.subr.mxu0 0.0
    %1967 = vmatpush1.msra.mxu0 0.0
    %1968 = vmatprep.subr.mxu0 0.0
    %1969 = vmatpush1.msra.mxu0 0.0
    %1970 = vmatprep.subr.mxu0 0.0
    %1971 = vmatpush1.msra.mxu0 0.0
    %1972 = vmatprep.subr.mxu0 0.0
    %1973 = vmatpush1.msra.mxu0 0.0
    %1974 = vmatprep.subr.mxu0 0.0
    %1975 = vmatpush1.msra.mxu0 0.0
    %1976 = vmatprep.subr.mxu0 0.0
    %1977 = vmatpush1.msra.mxu0 0.0
    %1978 = vmatprep.subr.mxu0 0.0
    %1979 = vmatpush1.msra.mxu0 0.0
    %1980 = vmatprep.subr.mxu0 0.0
    %1981 = vmatpush1.msra.mxu0 0.0
    %1982 = vmatprep.subr.mxu0 0.0
    %1983 = vmatpush1.msra.mxu0 0.0
    %1984 = vmatprep.mubr.f32.mxu0 0.0
    %1985 = vmatmul.mubr.f32.gmra.mrb[0].mxu0 %v1918
    %v1986 = vpop.f32.mrb[0].mxu0
    %v1987 = vadd.f32 0.0, %v1986
    %v1988 = vpop.f32.mrb[0].mxu0
    %1989 = vdwg.mxu0
    %v1990 = vld [vmem:[%s9 + $0x18] sm:$0xff]
    %v1992 = vsel %vm418, %v1911, 0
    %v1995 = vsel %vm418, %v1987, 0
    %1997 = vmatprep.subr.mxu0 0.0
    %1998 = vmatpush1.msra.mxu0 %v1990
    %1999 = vmatprep.subr.mxu0 0.0
    %2000 = vmatpush1.msra.mxu0 0.0
    %2001 = vmatprep.subr.mxu0 0.0
    %2002 = vmatpush1.msra.mxu0 0.0
    %2003 = vmatprep.subr.mxu0 0.0
    %2004 = vmatpush1.msra.mxu0 0.0
    %2005 = vmatprep.subr.mxu0 0.0
    %2006 = vmatpush1.msra.mxu0 0.0
    %2007 = vmatprep.subr.mxu0 0.0
    %2008 = vmatpush1.msra.mxu0 0.0
    %2009 = vmatprep.subr.mxu0 0.0
    %2010 = vmatpush1.msra.mxu0 0.0
    %2011 = vmatprep.subr.mxu0 0.0
    %2012 = vmatpush1.msra.mxu0 0.0
    %2013 = vmatprep.subr.mxu0 0.0
    %2014 = vmatpush1.msra.mxu0 0.0
    %2015 = vmatprep.subr.mxu0 0.0
    %2016 = vmatpush1.msra.mxu0 0.0
    %2017 = vmatprep.subr.mxu0 0.0
    %2018 = vmatpush1.msra.mxu0 0.0
    %2019 = vmatprep.subr.mxu0 0.0
    %2020 = vmatpush1.msra.mxu0 0.0
    %2021 = vmatprep.subr.mxu0 0.0
    %2022 = vmatpush1.msra.mxu0 0.0
    %2023 = vmatprep.subr.mxu0 0.0
    %2024 = vmatpush1.msra.mxu0 0.0
    %2025 = vmatprep.subr.mxu0 0.0
    %2026 = vmatpush1.msra.mxu0 0.0
    %2027 = vmatprep.subr.mxu0 0.0
    %2028 = vmatpush1.msra.mxu0 0.0
    %2029 = vmatprep.subr.mxu0 0.0
    %2030 = vmatpush1.msra.mxu0 0.0
    %2031 = vmatprep.subr.mxu0 0.0
    %2032 = vmatpush1.msra.mxu0 0.0
    %2033 = vmatprep.subr.mxu0 0.0
    %2034 = vmatpush1.msra.mxu0 0.0
    %2035 = vmatprep.subr.mxu0 0.0
    %2036 = vmatpush1.msra.mxu0 0.0
    %2037 = vmatprep.subr.mxu0 0.0
    %2038 = vmatpush1.msra.mxu0 0.0
    %2039 = vmatprep.subr.mxu0 0.0
    %2040 = vmatpush1.msra.mxu0 0.0
    %2041 = vmatprep.subr.mxu0 0.0
    %2042 = vmatpush1.msra.mxu0 0.0
    %2043 = vmatprep.subr.mxu0 0.0
    %2044 = vmatpush1.msra.mxu0 0.0
    %2045 = vmatprep.subr.mxu0 0.0
    %2046 = vmatpush1.msra.mxu0 0.0
    %2047 = vmatprep.subr.mxu0 0.0
    %2048 = vmatpush1.msra.mxu0 0.0
    %2049 = vmatprep.subr.mxu0 0.0
    %2050 = vmatpush1.msra.mxu0 0.0
    %2051 = vmatprep.subr.mxu0 0.0
    %2052 = vmatpush1.msra.mxu0 0.0
    %2053 = vmatprep.subr.mxu0 0.0
    %2054 = vmatpush1.msra.mxu0 0.0
    %2055 = vmatprep.subr.mxu0 0.0
    %2056 = vmatpush1.msra.mxu0 0.0
    %2057 = vmatprep.subr.mxu0 0.0
    %2058 = vmatpush1.msra.mxu0 0.0
    %2059 = vmatprep.subr.mxu0 0.0
    %2060 = vmatpush1.msra.mxu0 0.0
    %2061 = vmatprep.mubr.f32.mxu0 0.0
    %2062 = vmatmul.mubr.f32.gmra.mrb[0].mxu0 %v1992
    %v2063 = vpop.f32.mrb[0].mxu0
    %v2064 = vadd.f32 0.0, %v2063
    %v2065 = vpop.f32.mrb[0].mxu0
    %2066 = vmatprep.mubr.f32.mxu0 0.0
    %2067 = vmatmul.mubr.f32.gmra.mrb[0].mxu0 %v1995
    %v2068 = vpop.f32.mrb[0].mxu0
    %v2069 = vadd.f32 0.0, %v2068
    %v2070 = vpop.f32.mrb[0].mxu0
    %2071 = vdwg.mxu0
    %v2072 = vadd.f32 %v1655, %v2064
    %v2073 = vadd.f32 %v1656, %v2069
    %v2074 = vld [vmem:[%s10] sm:$0x1]
    %v2076 = vlaneseq
    %v2077 = vshrl.u32 %v2076, 7
    %v2078 = vsub.s32 0, %v2077
    %v2079 = vrot.slane %v2074, %v2078
    %v2081 = vadd.f32 %v2072, %v2079
    %v2082 = vadd.f32 %v2073, %v2079
    %2083 = vst.msk [vmem:[#allocation14] sm:$0xff] %vm152, %v2081
    %2084 = vst.msk [vmem:[#allocation14 + $0x8] sm:$0xff] %vm152, %v2082
    // Predicated region
    $region74: #{tpu_custom_call.1} parent=1 // pred_check
      _
    $region75: #{tpu_custom_call.1} parent=1 // pred_check_branch
      %2086 = sbr.rel (0) target = $region77
    $region76: #{tpu_custom_call.1} parent=1 // pred_region
      %s2088 = ssub.s32 256, 256
      %2089 = vsyncadd [#allocation4], %s2088
      %s2090 = sshll.u32 [#allocation14], 4
      %s2091 = int_to_ptr.vmem [resolvable:$true] %s2090
      %2096 = dma.vmem_to_hbm [thread:$0]  %s2091, 256, %s11, [#allocation4], 128, 128, 8
    $region77: #{tpu_custom_call.1} parent=1 // pred_fallthru
      _
    // Predicated region
    $region78: #{tpu_custom_call.1} parent=1 // pred_check
      _
    $region79: #{tpu_custom_call.1} parent=1 // pred_check_branch
      %2098 = sbr.rel (0) target = $region81
    $region80: #{tpu_custom_call.1} parent=1 // pred_region
      %s2100 = ssub.s32 1024, 1024
      %2101 = vsyncadd [#allocation16], %s2100
      %s2102 = sshll.u32 [#allocation15], 4
      %s2103 = int_to_ptr.vmem [resolvable:$true] %s2102
      %2108 = dma.vmem_to_hbm [thread:$0]  %s2103, 1024, %s12, [#allocation16], 128, 128, 8
    $region81: #{tpu_custom_call.1} parent=1 // pred_fallthru
      _
    // Predicated region
    $region82: #{tpu_custom_call.1} parent=1 // pred_check
      _
    $region83: #{tpu_custom_call.1} parent=1 // pred_check_branch
      %2110 = sbr.rel (0) target = $region85
    $region84: #{tpu_custom_call.1} parent=1 // pred_region
      %2111 = dma.done [#allocation4], 256
    $region85: #{tpu_custom_call.1} parent=1 // pred_fallthru
      _
    // Predicated region
    $region86: #{tpu_custom_call.1} parent=1 // pred_check
      _
    $region87: #{tpu_custom_call.1} parent=1 // pred_check_branch
      %2113 = sbr.rel (0) target = $region89
    $region88: #{tpu_custom_call.1} parent=1 // pred_region
      %2114 = dma.done [#allocation16], 1024
    $region89: #{tpu_custom_call.1} parent=1 // pred_fallthru
      _
    %2115 = vsyncpa [#allocation3], 1
    %2116 = vsyncpa [#allocation6], 1
    %2117 = vsyncpa [#allocation9], 1
    %2118 = vsyncpa [#allocation12], 1
    %2119 = vsyncpa [#allocation4], 1
    %2120 = vsyncpa [#allocation16], 1

</llo_original>
